<compile_context>
chip_gen: v7x
topology: tpu7x:2x2x1
jax: 0.10.0
libtpu: 0.0.40
codegen_flags: <defaults>
</compile_context>

<pallas_src>
import functools
import math

import jax
import jax.numpy as jnp
import numpy as np
from jax import lax
from jax.experimental import pallas as pl
from jax.experimental.pallas import tpu as pltpu

LN_EPS = 1e-5


# ----------------------------------------------------------------------------
# Kernel. grid = (N, n_k):
#   axis 0 ("parallel")  : batch element
#   axis 1 ("arbitrary") : tile of the MLP hidden dim (4E // mlp_block)
# k == 0       : attention branch + residual 1, LN2, init MLP accumulator
# every k      : one (E, mlp_block) x (mlp_block, E) slab of the MLP
# k == last    : residual 2 + writeback
# ----------------------------------------------------------------------------
def _rab_kernel(
    # inputs
    x_ref,                       # (1, L, E) f32
    ln1_g_ref, ln1_b_ref,        # (1, E)    f32
    wq_ref, wk_ref, wv_ref,      # (E, E)    bf16  (x @ W layout; Wq pre-scaled)
    bq_ref, bk_ref, bv_ref,      # (1, E)    f32   (bq pre-scaled)
    wout_ref,                    # (E, E)    bf16
    bout_ref,                    # (1, E)    f32
    ln2_g_ref, ln2_b_ref,        # (1, E)    f32
    wfc_ref, bfc_ref,            # (E, th) bf16, (1, th) f32
    wproj_ref,                   # (th, E) bf16
    bproj_ref,                   # (1, E)    f32
    # output
    o_ref,                       # (1, L, E)
    # scratch
    q_scr, k_scr, v_scr,         # (L, E) f32 : full-width Q/K/V
    oh_scr,                      # (L, E) f32 : concatenated per-head outputs
    x1_scr,                      # (L, E) f32 : x + attn(ln1(x)) residual
    h2_scr,                      # (L, E) bf16: ln2(x1)
    acc_scr,                     # (L, E) f32 : MLP accumulator
    *, n_head,
):
    k_step = pl.program_id(1)
    n_k = pl.num_programs(1)

    def layernorm(v, g, b):
        m = jnp.mean(v, axis=-1, keepdims=True)
        c = v - m
        var = jnp.mean(c * c, axis=-1, keepdims=True)
        return c * lax.rsqrt(var + LN_EPS) * g + b

    # ---- phase 1: attention branch (only on the first MLP-tile step) --------
    @pl.when(k_step == 0)
    def _attention_phase():
        x = x_ref[0].astype(jnp.float32)                        # (L, E)
        h = layernorm(x, ln1_g_ref[...], ln1_b_ref[...])
        h_b = h.astype(jnp.bfloat16)

        # Full-width QKV projections: three (L,E)x(E,E) matmuls — MXU stays
        # fully packed along the output columns (vs. Dh-wide per-head slabs).
        q_scr[...] = jnp.dot(h_b, wq_ref[...],
                             preferred_element_type=jnp.float32) + bq_ref[...]
        k_scr[...] = jnp.dot(h_b, wk_ref[...],
                             preferred_element_type=jnp.float32) + bk_ref[...]
        v_scr[...] = jnp.dot(h_b, wv_ref[...],
                             preferred_element_type=jnp.float32) + bv_ref[...]

        E = x.shape[-1]
        Dh = E // n_head

        # Per-head softmax attention; head h occupies lanes [h*Dh, (h+1)*Dh)
        # (same layout PyTorch MHA uses before out_proj).  Static Python loop
        # -> static lane slices, full scheduler visibility.
        for hh in range(n_head):
            sl = slice(hh * Dh, (hh + 1) * Dh)
            q = q_scr[:, sl].astype(jnp.bfloat16)               # (L, Dh)
            k = k_scr[:, sl].astype(jnp.bfloat16)
            v = v_scr[:, sl].astype(jnp.bfloat16)
            # Scores: contract last dims of both operands (no materialized k.T).
            s = lax.dot_general(q, k, (((1,), (1,)), ((), ())),
                                preferred_element_type=jnp.float32)  # (L, L)
            s = s - jnp.max(s, axis=-1, keepdims=True)
            p = jnp.exp(s)
            p = p * pl.reciprocal(jnp.sum(p, axis=-1, keepdims=True),
                                  approx=True)
            oh_scr[:, sl] = jnp.dot(p.astype(jnp.bfloat16), v,
                                    preferred_element_type=jnp.float32)

        # Single full-width out-projection over the concatenated heads.
        attn = jnp.dot(oh_scr[...].astype(jnp.bfloat16), wout_ref[...],
                       preferred_element_type=jnp.float32) + bout_ref[...]
        x1 = x + attn
        x1_scr[...] = x1
        h2_scr[...] = layernorm(x1, ln2_g_ref[...],
                                ln2_b_ref[...]).astype(jnp.bfloat16)
        acc_scr[...] = jnp.zeros_like(acc_scr)

    # ---- phase 2: one tile of the MLP hidden dim (every k) ------------------
    f = jnp.dot(h2_scr[...], wfc_ref[...],
                preferred_element_type=jnp.float32) + bfc_ref[...]   # (L, th)
    f = f * jax.nn.sigmoid(1.702 * f)                                 # QuickGELU
    acc_scr[...] += jnp.dot(f.astype(jnp.bfloat16), wproj_ref[...],
                            preferred_element_type=jnp.float32)

    # ---- phase 3: residual 2 + writeback (last MLP-tile step) ---------------
    @pl.when(k_step == n_k - 1)
    def _writeback():
        o_ref[0] = (x1_scr[...] + acc_scr[...]
                    + bproj_ref[...]).astype(o_ref.dtype)


# ----------------------------------------------------------------------------
# One-time parameter preparation: SSF folding + transposed layouts + query
# scaling fold + bf16 weight casts.  Call once and reuse (off the forward path).
# ----------------------------------------------------------------------------
def prepare_params(params, n_head, weight_dtype=jnp.bfloat16):
    p = params
    E = p["out_proj_weight"].shape[0]
    Dh = E // n_head
    q_scale = 1.0 / math.sqrt(Dh)

    wqkv = p["in_proj_weight"] * p["ssf_scale_1"][:, None] + p["ssf_shift_1"][:, None]
    bqkv = p["in_proj_bias"] * p["ssf_scale_2"] + p["ssf_shift_2"]
    wout = p["out_proj_weight"] * p["ssf_scale_3"][:, None] + p["ssf_shift_3"][:, None]
    bout = p["out_proj_bias"] * p["ssf_scale_4"] + p["ssf_shift_4"]

    f32 = jnp.float32
    return dict(
        ln1_g=p["ln1_g"].reshape(1, E).astype(f32),
        ln1_b=p["ln1_b"].reshape(1, E).astype(f32),
        # x @ W layouts; 1/sqrt(Dh) folded into the Q projection.
        wq=(wqkv[:E].T * q_scale).astype(weight_dtype),
        wk=wqkv[E:2 * E].T.astype(weight_dtype),
        wv=wqkv[2 * E:].T.astype(weight_dtype),
        bq=(bqkv[:E] * q_scale).reshape(1, E).astype(f32),
        bk=bqkv[E:2 * E].reshape(1, E).astype(f32),
        bv=bqkv[2 * E:].reshape(1, E).astype(f32),
        wout=wout.T.astype(weight_dtype),
        bout=bout.reshape(1, E).astype(f32),
        ln2_g=p["ln2_g"].reshape(1, E).astype(f32),
        ln2_b=p["ln2_b"].reshape(1, E).astype(f32),
        wfc=p["c_fc_w"].T.astype(weight_dtype),            # (E, 4E)
        bfc=p["c_fc_b"].reshape(1, 4 * E).astype(f32),
        wproj=p["c_proj_w"].T.astype(weight_dtype),        # (4E, E)
        bproj=p["c_proj_b"].reshape(1, E).astype(f32),
    )


# ----------------------------------------------------------------------------
# Forward wrapper.
# ----------------------------------------------------------------------------
def residual_attention_block(x, prepped, n_head, *, mlp_block=None):
    """x: (L, N, E) float32, matching PyTorch (seq, batch, d_model)."""
    L, N, E = x.shape
    assert E % n_head == 0
    hidden = prepped["wfc"].shape[1]                       # 4E

    if mlp_block is None:
        mlp_block = hidden if hidden <= 512 else 512
    if hidden % mlp_block != 0 or (mlp_block % 128 != 0 and mlp_block != hidden):
        mlp_block = hidden
    n_k = hidden // mlp_block

    xb = jnp.transpose(x, (1, 0, 2))                       # (N, L, E)

    args = (
        xb,
        prepped["ln1_g"], prepped["ln1_b"],
        prepped["wq"], prepped["wk"], prepped["wv"],
        prepped["bq"], prepped["bk"], prepped["bv"],
        prepped["wout"], prepped["bout"],
        prepped["ln2_g"], prepped["ln2_b"],
        prepped["wfc"], prepped["bfc"], prepped["wproj"], prepped["bproj"],
    )

    def const_spec(a):
        nd = a.ndim
        return pl.BlockSpec(a.shape, lambda n, k, _nd=nd: (0,) * _nd)

    in_specs = [pl.BlockSpec((1, L, E), lambda n, k: (n, 0, 0))]
    in_specs += [const_spec(a) for a in args[1:13]]        # resident weights
    in_specs += [
        pl.BlockSpec((E, mlp_block), lambda n, k: (0, k)),  # wfc tile
        pl.BlockSpec((1, mlp_block), lambda n, k: (0, k)),  # bfc tile
        pl.BlockSpec((mlp_block, E), lambda n, k: (k, 0)),  # wproj tile
        const_spec(prepped["bproj"]),
    ]

    out = pl.pallas_call(
        functools.partial(_rab_kernel, n_head=n_head),
        out_shape=jax.ShapeDtypeStruct((N, L, E), x.dtype),
        grid=(N, n_k),
        in_specs=in_specs,
        out_specs=pl.BlockSpec((1, L, E), lambda n, k: (n, 0, 0)),
        scratch_shapes=[
            pltpu.VMEM((L, E), jnp.float32),    # Q
            pltpu.VMEM((L, E), jnp.float32),    # K
            pltpu.VMEM((L, E), jnp.float32),    # V
            pltpu.VMEM((L, E), jnp.float32),    # concatenated head outputs
            pltpu.VMEM((L, E), jnp.float32),    # x1 = x + attention
            pltpu.VMEM((L, E), jnp.bfloat16),   # ln2(x1)
            pltpu.VMEM((L, E), jnp.float32),    # MLP accumulator
        ],
        compiler_params=pltpu.CompilerParams(
            dimension_semantics=("parallel", "arbitrary"),
            vmem_limit_bytes=64 * 1024 * 1024,
        ),
    )(*args)

    return jnp.transpose(out, (1, 0, 2))                   # back to (L, N, E)


# ----------------------------------------------------------------------------
# Pure-JAX f32 reference (mirrors PyTorch semantics) for the correctness check.
# ----------------------------------------------------------------------------
def reference(x, p, n_head):
    L, N, E = x.shape
    Dh = E // n_head
    wqkv = p["in_proj_weight"] * p["ssf_scale_1"][:, None] + p["ssf_shift_1"][:, None]
    bqkv = p["in_proj_bias"] * p["ssf_scale_2"] + p["ssf_shift_2"]
    wout = p["out_proj_weight"] * p["ssf_scale_3"][:, None] + p["ssf_shift_3"][:, None]
    bout = p["out_proj_bias"] * p["ssf_scale_4"] + p["ssf_shift_4"]

    def ln(v, g, b):
        m = v.mean(-1, keepdims=True)
        var = ((v - m) ** 2).mean(-1, keepdims=True)
        return (v - m) / jnp.sqrt(var + LN_EPS) * g + b

    h = ln(x, p["ln1_g"], p["ln1_b"])
    qkv = h @ wqkv.T + bqkv
    q, k, v = jnp.split(qkv, 3, axis=-1)

    def heads(t):
        return jnp.transpose(t.reshape(L, N, n_head, Dh), (1, 2, 0, 3))

    qh = heads(q) / jnp.sqrt(Dh)
    kh, vh = heads(k), heads(v)
    s = jnp.einsum("nhld,nhmd->nhlm", qh, kh)
    pm = jax.nn.softmax(s, axis=-1)
    o = jnp.einsum("nhlm,nhmd->nhld", pm, vh)
    o = jnp.transpose(o, (2, 0, 1, 3)).reshape(L, N, E)
    x = x + o @ wout.T + bout

    h2 = ln(x, p["ln2_g"], p["ln2_b"])
    f = h2 @ p["c_fc_w"].T + p["c_fc_b"]
    f = f * jax.nn.sigmoid(1.702 * f)
    return x + f @ p["c_proj_w"].T + p["c_proj_b"]


# ----------------------------------------------------------------------------
def make_params(key, d_model, dtype=jnp.float32):
    E = d_model
    ks = jax.random.split(key, 16)
    nrm = lambda k, shape, std: std * jax.random.normal(k, shape, dtype)
    return {
        "in_proj_weight": nrm(ks[0], (3 * E, E), 0.05),
        "in_proj_bias":   nrm(ks[1], (3 * E,), 0.02),
        "out_proj_weight": nrm(ks[2], (E, E), 0.05),
        "out_proj_bias":  nrm(ks[3], (E,), 0.02),
        "ln1_g": jnp.ones((E,), dtype), "ln1_b": jnp.zeros((E,), dtype),
        "ln2_g": jnp.ones((E,), dtype), "ln2_b": jnp.zeros((E,), dtype),
        "c_fc_w":   nrm(ks[4], (4 * E, E), 0.05),
        "c_fc_b":   nrm(ks[5], (4 * E,), 0.02),
        "c_proj_w": nrm(ks[6], (E, 4 * E), 0.05),
        "c_proj_b": nrm(ks[7], (E,), 0.02),
        # SSF params: scale ~ N(1, 0.02), shift ~ N(0, 0.02)
        "ssf_scale_1": 1.0 + nrm(ks[8], (3 * E,), 0.02),
        "ssf_shift_1": nrm(ks[9], (3 * E,), 0.02),
        "ssf_scale_2": 1.0 + nrm(ks[10], (3 * E,), 0.02),
        "ssf_shift_2": nrm(ks[11], (3 * E,), 0.02),
        "ssf_scale_3": 1.0 + nrm(ks[12], (E,), 0.02),
        "ssf_shift_3": nrm(ks[13], (E,), 0.02),
        "ssf_scale_4": 1.0 + nrm(ks[14], (E,), 0.02),
        "ssf_shift_4": nrm(ks[15], (E,), 0.02),
    }


if __name__ == "__main__":
    L, N, d_model, n_head = 8, 2, 64, 4    # seq, batch, width, heads (Dh = 16)
    key = jax.random.PRNGKey(0)
    kx, kp = jax.random.split(key)
    x = jax.random.normal(kx, (L, N, d_model), jnp.float32)
    params = make_params(kp, d_model)

    # Hoisted, one-time SSF fold + weight re-layout (not on the forward path).
    prepped = prepare_params(params, n_head)

    # mlp_block=128 with 4E=256 -> two MLP grid steps: exercises the tiled path.
    run = jax.jit(functools.partial(residual_attention_block,
                                    n_head=n_head, mlp_block=128))
    out = jax.block_until_ready(run(x, prepped))

    ref = jax.block_until_ready(reference(x, params, n_head))
    np.testing.assert_allclose(np.asarray(out), np.asarray(ref),
                               rtol=3e-2, atol=3e-2)
    print("KERNEL_OK")
</pallas_src>

<mosaic_0001>
module attributes {stable_mosaic.version = 11 : i64} {
  func.func @_rab_kernel(%arg0: i32, %arg1: i32, %arg2: memref<1x8x64xf32, #tpu.memory_space<vmem>>, %arg3: memref<1x64xf32, #tpu.memory_space<vmem>>, %arg4: memref<1x64xf32, #tpu.memory_space<vmem>>, %arg5: memref<64x64xbf16, #tpu.memory_space<vmem>>, %arg6: memref<64x64xbf16, #tpu.memory_space<vmem>>, %arg7: memref<64x64xbf16, #tpu.memory_space<vmem>>, %arg8: memref<1x64xf32, #tpu.memory_space<vmem>>, %arg9: memref<1x64xf32, #tpu.memory_space<vmem>>, %arg10: memref<1x64xf32, #tpu.memory_space<vmem>>, %arg11: memref<64x64xbf16, #tpu.memory_space<vmem>>, %arg12: memref<1x64xf32, #tpu.memory_space<vmem>>, %arg13: memref<1x64xf32, #tpu.memory_space<vmem>>, %arg14: memref<1x64xf32, #tpu.memory_space<vmem>>, %arg15: memref<64x128xbf16, #tpu.memory_space<vmem>>, %arg16: memref<1x128xf32, #tpu.memory_space<vmem>>, %arg17: memref<128x64xbf16, #tpu.memory_space<vmem>>, %arg18: memref<1x64xf32, #tpu.memory_space<vmem>>, %arg19: memref<1x8x64xf32, #tpu.memory_space<vmem>>, %arg20: memref<8x64xf32, #tpu.memory_space<vmem>>, %arg21: memref<8x64xf32, #tpu.memory_space<vmem>>, %arg22: memref<8x64xf32, #tpu.memory_space<vmem>>, %arg23: memref<8x64xf32, #tpu.memory_space<vmem>>, %arg24: memref<8x64xf32, #tpu.memory_space<vmem>>, %arg25: memref<8x64xbf16, #tpu.memory_space<vmem>>, %arg26: memref<8x64xf32, #tpu.memory_space<vmem>>) attributes {dimension_semantics = [#tpu.dimension_semantics<parallel>, #tpu.dimension_semantics<arbitrary>], iteration_bounds = array<i64: 2, 2>, scalar_prefetch = 0 : i64, scratch_operands = 7 : i64, tpu.core_type = #tpu.core_type<tc>, window_params = [{transform_indices = @transform_0, window_bounds = array<i64: 1, 8, 64>}, {pipeline_mode = #tpu.pipeline_mode<synchronous>, transform_indices = @transform_1, window_bounds = array<i64: 1, 64>}, {pipeline_mode = #tpu.pipeline_mode<synchronous>, transform_indices = @transform_2, window_bounds = array<i64: 1, 64>}, {pipeline_mode = #tpu.pipeline_mode<synchronous>, transform_indices = @transform_3, window_bounds = array<i64: 64, 64>}, {pipeline_mode = #tpu.pipeline_mode<synchronous>, transform_indices = @transform_4, window_bounds = array<i64: 64, 64>}, {pipeline_mode = #tpu.pipeline_mode<synchronous>, transform_indices = @transform_5, window_bounds = array<i64: 64, 64>}, {pipeline_mode = #tpu.pipeline_mode<synchronous>, transform_indices = @transform_6, window_bounds = array<i64: 1, 64>}, {pipeline_mode = #tpu.pipeline_mode<synchronous>, transform_indices = @transform_7, window_bounds = array<i64: 1, 64>}, {pipeline_mode = #tpu.pipeline_mode<synchronous>, transform_indices = @transform_8, window_bounds = array<i64: 1, 64>}, {pipeline_mode = #tpu.pipeline_mode<synchronous>, transform_indices = @transform_9, window_bounds = array<i64: 64, 64>}, {pipeline_mode = #tpu.pipeline_mode<synchronous>, transform_indices = @transform_10, window_bounds = array<i64: 1, 64>}, {pipeline_mode = #tpu.pipeline_mode<synchronous>, transform_indices = @transform_11, window_bounds = array<i64: 1, 64>}, {pipeline_mode = #tpu.pipeline_mode<synchronous>, transform_indices = @transform_12, window_bounds = array<i64: 1, 64>}, {transform_indices = @transform_13, window_bounds = array<i64: 64, 128>}, {transform_indices = @transform_14, window_bounds = array<i64: 1, 128>}, {transform_indices = @transform_15, window_bounds = array<i64: 128, 64>}, {pipeline_mode = #tpu.pipeline_mode<synchronous>, transform_indices = @transform_16, window_bounds = array<i64: 1, 64>}, {transform_indices = @transform_17, window_bounds = array<i64: 1, 8, 64>}]} {
    %c0_i32 = arith.constant 0 : i32
    %0 = arith.cmpi eq, %arg1, %c0_i32 : i32
    %1 = arith.extui %0 : i1 to i32
    %c0_i32_0 = arith.constant 0 : i32
    %2 = arith.cmpi ne, %1, %c0_i32_0 : i32
    scf.if %2 {
      %c0_16 = arith.constant 0 : index
      %c0_17 = arith.constant 0 : index
      %c0_18 = arith.constant 0 : index
      %26 = vector.load %arg2[%c0_16, %c0_17, %c0_18] : memref<1x8x64xf32, #tpu.memory_space<vmem>>, vector<1x8x64xf32>
      %27 = vector.shape_cast %26 : vector<1x8x64xf32> to vector<8x64xf32>
      %c0_19 = arith.constant 0 : index
      %c0_20 = arith.constant 0 : index
      %28 = vector.load %arg3[%c0_19, %c0_20] : memref<1x64xf32, #tpu.memory_space<vmem>>, vector<1x64xf32>
      %c0_21 = arith.constant 0 : index
      %c0_22 = arith.constant 0 : index
      %29 = vector.load %arg4[%c0_21, %c0_22] : memref<1x64xf32, #tpu.memory_space<vmem>>, vector<1x64xf32>
      %cst_23 = arith.constant dense<0.000000e+00> : vector<8xf32>
      %30 = vector.multi_reduction <add>, %27, %cst_23 [1] : vector<8x64xf32> to vector<8xf32>
      %31 = vector.shape_cast %30 : vector<8xf32> to vector<8x1xf32>
      %cst_24 = arith.constant 6.400000e+01 : f32
      %32 = vector.broadcast %cst_24 : f32 to vector<8x1xf32>
      %33 = arith.divf %31, %32 : vector<8x1xf32>
      %34 = vector.broadcast %33 : vector<8x1xf32> to vector<8x64xf32>
      %35 = arith.subf %27, %34 : vector<8x64xf32>
      %36 = arith.mulf %35, %35 : vector<8x64xf32>
      %cst_25 = arith.constant dense<0.000000e+00> : vector<8xf32>
      %37 = vector.multi_reduction <add>, %36, %cst_25 [1] : vector<8x64xf32> to vector<8xf32>
      %38 = vector.shape_cast %37 : vector<8xf32> to vector<8x1xf32>
      %cst_26 = arith.constant 6.400000e+01 : f32
      %39 = vector.broadcast %cst_26 : f32 to vector<8x1xf32>
      %40 = arith.divf %38, %39 : vector<8x1xf32>
      %cst_27 = arith.constant 9.99999974E-6 : f32
      %41 = vector.broadcast %cst_27 : f32 to vector<8x1xf32>
      %42 = arith.addf %40, %41 : vector<8x1xf32>
      %43 = math.rsqrt %42 : vector<8x1xf32>
      %44 = vector.broadcast %43 : vector<8x1xf32> to vector<8x64xf32>
      %45 = arith.mulf %35, %44 : vector<8x64xf32>
      %46 = vector.broadcast %28 : vector<1x64xf32> to vector<8x64xf32>
      %47 = arith.mulf %45, %46 : vector<8x64xf32>
      %48 = vector.broadcast %29 : vector<1x64xf32> to vector<8x64xf32>
      %49 = arith.addf %47, %48 : vector<8x64xf32>
      %50 = arith.truncf %49 : vector<8x64xf32> to vector<8x64xbf16>
      %c0_28 = arith.constant 0 : index
      %c0_29 = arith.constant 0 : index
      %51 = vector.load %arg5[%c0_28, %c0_29] : memref<64x64xbf16, #tpu.memory_space<vmem>>, vector<64x64xbf16>
      %cst_30 = arith.constant dense<0.000000e+00> : vector<8x64xf32>
      %52 = tpu.matmul %50, %51, %cst_30 {dimension_numbers = #tpu.dot_dimension_numbers<[1], [0], [0], [1], [0, 0, 1, 1], [], []>} : vector<8x64xbf16>, vector<64x64xbf16>, vector<8x64xf32> -> vector<8x64xf32>
      %c0_31 = arith.constant 0 : index
      %c0_32 = arith.constant 0 : index
      %53 = vector.load %arg8[%c0_31, %c0_32] : memref<1x64xf32, #tpu.memory_space<vmem>>, vector<1x64xf32>
      %54 = vector.broadcast %53 : vector<1x64xf32> to vector<8x64xf32>
      %55 = arith.addf %52, %54 : vector<8x64xf32>
      %c0_33 = arith.constant 0 : index
      %c0_34 = arith.constant 0 : index
      %56 = vector.load %arg20[%c0_33, %c0_34] : memref<8x64xf32, #tpu.memory_space<vmem>>, vector<8x64xf32>
      tpu.vector_store %arg20[%c0_33, %c0_34], %55 {strides = array<i32>} : memref<8x64xf32, #tpu.memory_space<vmem>>, vector<8x64xf32>,
      %c0_35 = arith.constant 0 : index
      %c0_36 = arith.constant 0 : index
      %57 = vector.load %arg6[%c0_35, %c0_36] : memref<64x64xbf16, #tpu.memory_space<vmem>>, vector<64x64xbf16>
      %cst_37 = arith.constant dense<0.000000e+00> : vector<8x64xf32>
      %58 = tpu.matmul %50, %57, %cst_37 {dimension_numbers = #tpu.dot_dimension_numbers<[1], [0], [0], [1], [0, 0, 1, 1], [], []>} : vector<8x64xbf16>, vector<64x64xbf16>, vector<8x64xf32> -> vector<8x64xf32>
      %c0_38 = arith.constant 0 : index
      %c0_39 = arith.constant 0 : index
      %59 = vector.load %arg9[%c0_38, %c0_39] : memref<1x64xf32, #tpu.memory_space<vmem>>, vector<1x64xf32>
      %60 = vector.broadcast %59 : vector<1x64xf32> to vector<8x64xf32>
      %61 = arith.addf %58, %60 : vector<8x64xf32>
      %c0_40 = arith.constant 0 : index
      %c0_41 = arith.constant 0 : index
      %62 = vector.load %arg21[%c0_40, %c0_41] : memref<8x64xf32, #tpu.memory_space<vmem>>, vector<8x64xf32>
      tpu.vector_store %arg21[%c0_40, %c0_41], %61 {strides = array<i32>} : memref<8x64xf32, #tpu.memory_space<vmem>>, vector<8x64xf32>,
      %c0_42 = arith.constant 0 : index
      %c0_43 = arith.constant 0 : index
      %63 = vector.load %arg7[%c0_42, %c0_43] : memref<64x64xbf16, #tpu.memory_space<vmem>>, vector<64x64xbf16>
      %cst_44 = arith.constant dense<0.000000e+00> : vector<8x64xf32>
      %64 = tpu.matmul %50, %63, %cst_44 {dimension_numbers = #tpu.dot_dimension_numbers<[1], [0], [0], [1], [0, 0, 1, 1], [], []>} : vector<8x64xbf16>, vector<64x64xbf16>, vector<8x64xf32> -> vector<8x64xf32>
      %c0_45 = arith.constant 0 : index
      %c0_46 = arith.constant 0 : index
      %65 = vector.load %arg10[%c0_45, %c0_46] : memref<1x64xf32, #tpu.memory_space<vmem>>, vector<1x64xf32>
      %66 = vector.broadcast %65 : vector<1x64xf32> to vector<8x64xf32>
      %67 = arith.addf %64, %66 : vector<8x64xf32>
      %c0_47 = arith.constant 0 : index
      %c0_48 = arith.constant 0 : index
      %68 = vector.load %arg22[%c0_47, %c0_48] : memref<8x64xf32, #tpu.memory_space<vmem>>, vector<8x64xf32>
      tpu.vector_store %arg22[%c0_47, %c0_48], %67 {strides = array<i32>} : memref<8x64xf32, #tpu.memory_space<vmem>>, vector<8x64xf32>,
      %c0_49 = arith.constant 0 : index
      %c0_50 = arith.constant 0 : index
      %69 = vector.load %arg20[%c0_49, %c0_50] : memref<8x64xf32, #tpu.memory_space<vmem>>, vector<8x16xf32>
      %70 = arith.truncf %69 : vector<8x16xf32> to vector<8x16xbf16>
      %c0_51 = arith.constant 0 : index
      %c0_52 = arith.constant 0 : index
      %71 = vector.load %arg21[%c0_51, %c0_52] : memref<8x64xf32, #tpu.memory_space<vmem>>, vector<8x16xf32>
      %72 = arith.truncf %71 : vector<8x16xf32> to vector<8x16xbf16>
      %c0_53 = arith.constant 0 : index
      %c0_54 = arith.constant 0 : index
      %73 = vector.load %arg22[%c0_53, %c0_54] : memref<8x64xf32, #tpu.memory_space<vmem>>, vector<8x16xf32>
      %74 = arith.truncf %73 : vector<8x16xf32> to vector<8x16xbf16>
      %cst_55 = arith.constant dense<0.000000e+00> : vector<8x8xf32>
      %75 = tpu.matmul %70, %72, %cst_55 {dimension_numbers = #tpu.dot_dimension_numbers<[1], [1], [0], [0], [0, 0, 1, 0], [], []>} : vector<8x16xbf16>, vector<8x16xbf16>, vector<8x8xf32> -> vector<8x8xf32>
      %cst_56 = arith.constant dense<0xFF800000> : vector<8xf32>
      %76 = vector.multi_reduction <maximumf>, %75, %cst_56 [1] : vector<8x8xf32> to vector<8xf32>
      %77 = vector.shape_cast %76 : vector<8xf32> to vector<8x1xf32>
      %78 = vector.broadcast %77 : vector<8x1xf32> to vector<8x8xf32>
      %79 = arith.subf %75, %78 : vector<8x8xf32>
      %80 = math.exp %79 : vector<8x8xf32>
      %cst_57 = arith.constant dense<0.000000e+00> : vector<8xf32>
      %81 = vector.multi_reduction <add>, %80, %cst_57 [1] : vector<8x8xf32> to vector<8xf32>
      %82 = vector.shape_cast %81 : vector<8xf32> to vector<8x1xf32>
      %83 = tpu.reciprocal %82 {approx = true} : vector<8x1xf32> -> vector<8x1xf32>
      %84 = vector.broadcast %83 : vector<8x1xf32> to vector<8x8xf32>
      %85 = arith.mulf %80, %84 : vector<8x8xf32>
      %86 = arith.truncf %85 : vector<8x8xf32> to vector<8x8xbf16>
      %cst_58 = arith.constant dense<0.000000e+00> : vector<8x16xf32>
      %87 = tpu.matmul %86, %74, %cst_58 {dimension_numbers = #tpu.dot_dimension_numbers<[1], [0], [0], [1], [0, 0, 1, 1], [], []>} : vector<8x8xbf16>, vector<8x16xbf16>, vector<8x16xf32> -> vector<8x16xf32>
      %c0_59 = arith.constant 0 : index
      %c0_60 = arith.constant 0 : index
      %88 = vector.load %arg23[%c0_59, %c0_60] : memref<8x64xf32, #tpu.memory_space<vmem>>, vector<8x16xf32>
      tpu.vector_store %arg23[%c0_59, %c0_60], %87 {strides = array<i32>} : memref<8x64xf32, #tpu.memory_space<vmem>>, vector<8x16xf32>,
      %c0_61 = arith.constant 0 : index
      %c16 = arith.constant 16 : index
      %89 = vector.load %arg20[%c0_61, %c16] : memref<8x64xf32, #tpu.memory_space<vmem>>, vector<8x16xf32>
      %90 = arith.truncf %89 : vector<8x16xf32> to vector<8x16xbf16>
      %c0_62 = arith.constant 0 : index
      %c16_63 = arith.constant 16 : index
      %91 = vector.load %arg21[%c0_62, %c16_63] : memref<8x64xf32, #tpu.memory_space<vmem>>, vector<8x16xf32>
      %92 = arith.truncf %91 : vector<8x16xf32> to vector<8x16xbf16>
      %c0_64 = arith.constant 0 : index
      %c16_65 = arith.constant 16 : index
      %93 = vector.load %arg22[%c0_64, %c16_65] : memref<8x64xf32, #tpu.memory_space<vmem>>, vector<8x16xf32>
      %94 = arith.truncf %93 : vector<8x16xf32> to vector<8x16xbf16>
      %cst_66 = arith.constant dense<0.000000e+00> : vector<8x8xf32>
      %95 = tpu.matmul %90, %92, %cst_66 {dimension_numbers = #tpu.dot_dimension_numbers<[1], [1], [0], [0], [0, 0, 1, 0], [], []>} : vector<8x16xbf16>, vector<8x16xbf16>, vector<8x8xf32> -> vector<8x8xf32>
      %cst_67 = arith.constant dense<0xFF800000> : vector<8xf32>
      %96 = vector.multi_reduction <maximumf>, %95, %cst_67 [1] : vector<8x8xf32> to vector<8xf32>
      %97 = vector.shape_cast %96 : vector<8xf32> to vector<8x1xf32>
      %98 = vector.broadcast %97 : vector<8x1xf32> to vector<8x8xf32>
      %99 = arith.subf %95, %98 : vector<8x8xf32>
      %100 = math.exp %99 : vector<8x8xf32>
      %cst_68 = arith.constant dense<0.000000e+00> : vector<8xf32>
      %101 = vector.multi_reduction <add>, %100, %cst_68 [1] : vector<8x8xf32> to vector<8xf32>
      %102 = vector.shape_cast %101 : vector<8xf32> to vector<8x1xf32>
      %103 = tpu.reciprocal %102 {approx = true} : vector<8x1xf32> -> vector<8x1xf32>
      %104 = vector.broadcast %103 : vector<8x1xf32> to vector<8x8xf32>
      %105 = arith.mulf %100, %104 : vector<8x8xf32>
      %106 = arith.truncf %105 : vector<8x8xf32> to vector<8x8xbf16>
      %cst_69 = arith.constant dense<0.000000e+00> : vector<8x16xf32>
      %107 = tpu.matmul %106, %94, %cst_69 {dimension_numbers = #tpu.dot_dimension_numbers<[1], [0], [0], [1], [0, 0, 1, 1], [], []>} : vector<8x8xbf16>, vector<8x16xbf16>, vector<8x16xf32> -> vector<8x16xf32>
      %c0_70 = arith.constant 0 : index
      %c16_71 = arith.constant 16 : index
      %108 = vector.load %arg23[%c0_70, %c16_71] : memref<8x64xf32, #tpu.memory_space<vmem>>, vector<8x16xf32>
      tpu.vector_store %arg23[%c0_70, %c16_71], %107 {strides = array<i32>} : memref<8x64xf32, #tpu.memory_space<vmem>>, vector<8x16xf32>,
      %c0_72 = arith.constant 0 : index
      %c32 = arith.constant 32 : index
      %109 = vector.load %arg20[%c0_72, %c32] : memref<8x64xf32, #tpu.memory_space<vmem>>, vector<8x16xf32>
      %110 = arith.truncf %109 : vector<8x16xf32> to vector<8x16xbf16>
      %c0_73 = arith.constant 0 : index
      %c32_74 = arith.constant 32 : index
      %111 = vector.load %arg21[%c0_73, %c32_74] : memref<8x64xf32, #tpu.memory_space<vmem>>, vector<8x16xf32>
      %112 = arith.truncf %111 : vector<8x16xf32> to vector<8x16xbf16>
      %c0_75 = arith.constant 0 : index
      %c32_76 = arith.constant 32 : index
      %113 = vector.load %arg22[%c0_75, %c32_76] : memref<8x64xf32, #tpu.memory_space<vmem>>, vector<8x16xf32>
      %114 = arith.truncf %113 : vector<8x16xf32> to vector<8x16xbf16>
      %cst_77 = arith.constant dense<0.000000e+00> : vector<8x8xf32>
      %115 = tpu.matmul %110, %112, %cst_77 {dimension_numbers = #tpu.dot_dimension_numbers<[1], [1], [0], [0], [0, 0, 1, 0], [], []>} : vector<8x16xbf16>, vector<8x16xbf16>, vector<8x8xf32> -> vector<8x8xf32>
      %cst_78 = arith.constant dense<0xFF800000> : vector<8xf32>
      %116 = vector.multi_reduction <maximumf>, %115, %cst_78 [1] : vector<8x8xf32> to vector<8xf32>
      %117 = vector.shape_cast %116 : vector<8xf32> to vector<8x1xf32>
      %118 = vector.broadcast %117 : vector<8x1xf32> to vector<8x8xf32>
      %119 = arith.subf %115, %118 : vector<8x8xf32>
      %120 = math.exp %119 : vector<8x8xf32>
      %cst_79 = arith.constant dense<0.000000e+00> : vector<8xf32>
      %121 = vector.multi_reduction <add>, %120, %cst_79 [1] : vector<8x8xf32> to vector<8xf32>
      %122 = vector.shape_cast %121 : vector<8xf32> to vector<8x1xf32>
      %123 = tpu.reciprocal %122 {approx = true} : vector<8x1xf32> -> vector<8x1xf32>
      %124 = vector.broadcast %123 : vector<8x1xf32> to vector<8x8xf32>
      %125 = arith.mulf %120, %124 : vector<8x8xf32>
      %126 = arith.truncf %125 : vector<8x8xf32> to vector<8x8xbf16>
      %cst_80 = arith.constant dense<0.000000e+00> : vector<8x16xf32>
      %127 = tpu.matmul %126, %114, %cst_80 {dimension_numbers = #tpu.dot_dimension_numbers<[1], [0], [0], [1], [0, 0, 1, 1], [], []>} : vector<8x8xbf16>, vector<8x16xbf16>, vector<8x16xf32> -> vector<8x16xf32>
      %c0_81 = arith.constant 0 : index
      %c32_82 = arith.constant 32 : index
      %128 = vector.load %arg23[%c0_81, %c32_82] : memref<8x64xf32, #tpu.memory_space<vmem>>, vector<8x16xf32>
      tpu.vector_store %arg23[%c0_81, %c32_82], %127 {strides = array<i32>} : memref<8x64xf32, #tpu.memory_space<vmem>>, vector<8x16xf32>,
      %c0_83 = arith.constant 0 : index
      %c48 = arith.constant 48 : index
      %129 = vector.load %arg20[%c0_83, %c48] : memref<8x64xf32, #tpu.memory_space<vmem>>, vector<8x16xf32>
      %130 = arith.truncf %129 : vector<8x16xf32> to vector<8x16xbf16>
      %c0_84 = arith.constant 0 : index
      %c48_85 = arith.constant 48 : index
      %131 = vector.load %arg21[%c0_84, %c48_85] : memref<8x64xf32, #tpu.memory_space<vmem>>, vector<8x16xf32>
      %132 = arith.truncf %131 : vector<8x16xf32> to vector<8x16xbf16>
      %c0_86 = arith.constant 0 : index
      %c48_87 = arith.constant 48 : index
      %133 = vector.load %arg22[%c0_86, %c48_87] : memref<8x64xf32, #tpu.memory_space<vmem>>, vector<8x16xf32>
      %134 = arith.truncf %133 : vector<8x16xf32> to vector<8x16xbf16>
      %cst_88 = arith.constant dense<0.000000e+00> : vector<8x8xf32>
      %135 = tpu.matmul %130, %132, %cst_88 {dimension_numbers = #tpu.dot_dimension_numbers<[1], [1], [0], [0], [0, 0, 1, 0], [], []>} : vector<8x16xbf16>, vector<8x16xbf16>, vector<8x8xf32> -> vector<8x8xf32>
      %cst_89 = arith.constant dense<0xFF800000> : vector<8xf32>
      %136 = vector.multi_reduction <maximumf>, %135, %cst_89 [1] : vector<8x8xf32> to vector<8xf32>
      %137 = vector.shape_cast %136 : vector<8xf32> to vector<8x1xf32>
      %138 = vector.broadcast %137 : vector<8x1xf32> to vector<8x8xf32>
      %139 = arith.subf %135, %138 : vector<8x8xf32>
      %140 = math.exp %139 : vector<8x8xf32>
      %cst_90 = arith.constant dense<0.000000e+00> : vector<8xf32>
      %141 = vector.multi_reduction <add>, %140, %cst_90 [1] : vector<8x8xf32> to vector<8xf32>
      %142 = vector.shape_cast %141 : vector<8xf32> to vector<8x1xf32>
      %143 = tpu.reciprocal %142 {approx = true} : vector<8x1xf32> -> vector<8x1xf32>
      %144 = vector.broadcast %143 : vector<8x1xf32> to vector<8x8xf32>
      %145 = arith.mulf %140, %144 : vector<8x8xf32>
      %146 = arith.truncf %145 : vector<8x8xf32> to vector<8x8xbf16>
      %cst_91 = arith.constant dense<0.000000e+00> : vector<8x16xf32>
      %147 = tpu.matmul %146, %134, %cst_91 {dimension_numbers = #tpu.dot_dimension_numbers<[1], [0], [0], [1], [0, 0, 1, 1], [], []>} : vector<8x8xbf16>, vector<8x16xbf16>, vector<8x16xf32> -> vector<8x16xf32>
      %c0_92 = arith.constant 0 : index
      %c48_93 = arith.constant 48 : index
      %148 = vector.load %arg23[%c0_92, %c48_93] : memref<8x64xf32, #tpu.memory_space<vmem>>, vector<8x16xf32>
      tpu.vector_store %arg23[%c0_92, %c48_93], %147 {strides = array<i32>} : memref<8x64xf32, #tpu.memory_space<vmem>>, vector<8x16xf32>,
      %c0_94 = arith.constant 0 : index
      %c0_95 = arith.constant 0 : index
      %149 = vector.load %arg23[%c0_94, %c0_95] : memref<8x64xf32, #tpu.memory_space<vmem>>, vector<8x64xf32>
      %150 = arith.truncf %149 : vector<8x64xf32> to vector<8x64xbf16>
      %c0_96 = arith.constant 0 : index
      %c0_97 = arith.constant 0 : index
      %151 = vector.load %arg11[%c0_96, %c0_97] : memref<64x64xbf16, #tpu.memory_space<vmem>>, vector<64x64xbf16>
      %cst_98 = arith.constant dense<0.000000e+00> : vector<8x64xf32>
      %152 = tpu.matmul %150, %151, %cst_98 {dimension_numbers = #tpu.dot_dimension_numbers<[1], [0], [0], [1], [0, 0, 1, 1], [], []>} : vector<8x64xbf16>, vector<64x64xbf16>, vector<8x64xf32> -> vector<8x64xf32>
      %c0_99 = arith.constant 0 : index
      %c0_100 = arith.constant 0 : index
      %153 = vector.load %arg12[%c0_99, %c0_100] : memref<1x64xf32, #tpu.memory_space<vmem>>, vector<1x64xf32>
      %154 = vector.broadcast %153 : vector<1x64xf32> to vector<8x64xf32>
      %155 = arith.addf %152, %154 : vector<8x64xf32>
      %156 = arith.addf %27, %155 : vector<8x64xf32>
      %c0_101 = arith.constant 0 : index
      %c0_102 = arith.constant 0 : index
      %157 = vector.load %arg24[%c0_101, %c0_102] : memref<8x64xf32, #tpu.memory_space<vmem>>, vector<8x64xf32>
      tpu.vector_store %arg24[%c0_101, %c0_102], %156 {strides = array<i32>} : memref<8x64xf32, #tpu.memory_space<vmem>>, vector<8x64xf32>,
      %c0_103 = arith.constant 0 : index
      %c0_104 = arith.constant 0 : index
      %158 = vector.load %arg13[%c0_103, %c0_104] : memref<1x64xf32, #tpu.memory_space<vmem>>, vector<1x64xf32>
      %c0_105 = arith.constant 0 : index
      %c0_106 = arith.constant 0 : index
      %159 = vector.load %arg14[%c0_105, %c0_106] : memref<1x64xf32, #tpu.memory_space<vmem>>, vector<1x64xf32>
      %cst_107 = arith.constant dense<0.000000e+00> : vector<8xf32>
      %160 = vector.multi_reduction <add>, %156, %cst_107 [1] : vector<8x64xf32> to vector<8xf32>
      %161 = vector.shape_cast %160 : vector<8xf32> to vector<8x1xf32>
      %cst_108 = arith.constant 6.400000e+01 : f32
      %162 = vector.broadcast %cst_108 : f32 to vector<8x1xf32>
      %163 = arith.divf %161, %162 : vector<8x1xf32>
      %164 = vector.broadcast %163 : vector<8x1xf32> to vector<8x64xf32>
      %165 = arith.subf %156, %164 : vector<8x64xf32>
      %166 = arith.mulf %165, %165 : vector<8x64xf32>
      %cst_109 = arith.constant dense<0.000000e+00> : vector<8xf32>
      %167 = vector.multi_reduction <add>, %166, %cst_109 [1] : vector<8x64xf32> to vector<8xf32>
      %168 = vector.shape_cast %167 : vector<8xf32> to vector<8x1xf32>
      %cst_110 = arith.constant 6.400000e+01 : f32
      %169 = vector.broadcast %cst_110 : f32 to vector<8x1xf32>
      %170 = arith.divf %168, %169 : vector<8x1xf32>
      %cst_111 = arith.constant 9.99999974E-6 : f32
      %171 = vector.broadcast %cst_111 : f32 to vector<8x1xf32>
      %172 = arith.addf %170, %171 : vector<8x1xf32>
      %173 = math.rsqrt %172 : vector<8x1xf32>
      %174 = vector.broadcast %173 : vector<8x1xf32> to vector<8x64xf32>
      %175 = arith.mulf %165, %174 : vector<8x64xf32>
      %176 = vector.broadcast %158 : vector<1x64xf32> to vector<8x64xf32>
      %177 = arith.mulf %175, %176 : vector<8x64xf32>
      %178 = vector.broadcast %159 : vector<1x64xf32> to vector<8x64xf32>
      %179 = arith.addf %177, %178 : vector<8x64xf32>
      %180 = arith.truncf %179 : vector<8x64xf32> to vector<8x64xbf16>
      %c0_112 = arith.constant 0 : index
      %c0_113 = arith.constant 0 : index
      %181 = vector.load %arg25[%c0_112, %c0_113] : memref<8x64xbf16, #tpu.memory_space<vmem>>, vector<8x64xbf16>
      tpu.vector_store %arg25[%c0_112, %c0_113], %180 {strides = array<i32>} : memref<8x64xbf16, #tpu.memory_space<vmem>>, vector<8x64xbf16>,
      %cst_114 = arith.constant 0.000000e+00 : f32
      %182 = vector.broadcast %cst_114 : f32 to vector<8x64xf32>
      %c0_115 = arith.constant 0 : index
      %c0_116 = arith.constant 0 : index
      %183 = vector.load %arg26[%c0_115, %c0_116] : memref<8x64xf32, #tpu.memory_space<vmem>>, vector<8x64xf32>
      tpu.vector_store %arg26[%c0_115, %c0_116], %182 {strides = array<i32>} : memref<8x64xf32, #tpu.memory_space<vmem>>, vector<8x64xf32>,
    } else {
    }
    %c0 = arith.constant 0 : index
    %c0_1 = arith.constant 0 : index
    %3 = vector.load %arg25[%c0, %c0_1] : memref<8x64xbf16, #tpu.memory_space<vmem>>, vector<8x64xbf16>
    %c0_2 = arith.constant 0 : index
    %c0_3 = arith.constant 0 : index
    %4 = vector.load %arg15[%c0_2, %c0_3] : memref<64x128xbf16, #tpu.memory_space<vmem>>, vector<64x128xbf16>
    %cst = arith.constant dense<0.000000e+00> : vector<8x128xf32>
    %5 = tpu.matmul %3, %4, %cst {dimension_numbers = #tpu.dot_dimension_numbers<[1], [0], [0], [1], [0, 0, 1, 1], [], []>} : vector<8x64xbf16>, vector<64x128xbf16>, vector<8x128xf32> -> vector<8x128xf32>
    %c0_4 = arith.constant 0 : index
    %c0_5 = arith.constant 0 : index
    %6 = vector.load %arg16[%c0_4, %c0_5] : memref<1x128xf32, #tpu.memory_space<vmem>>, vector<1x128xf32>
    %7 = vector.broadcast %6 : vector<1x128xf32> to vector<8x128xf32>
    %8 = arith.addf %5, %7 : vector<8x128xf32>
    %cst_6 = arith.constant 1.702000e+00 : f32
    %9 = vector.broadcast %cst_6 : f32 to vector<8x128xf32>
    %10 = arith.mulf %9, %8 : vector<8x128xf32>
    %11 = arith.negf %10 : vector<8x128xf32>
    %12 = math.exp %11 : vector<8x128xf32>
    %cst_7 = arith.constant 1.000000e+00 : f32
    %13 = vector.broadcast %cst_7 : f32 to vector<8x128xf32>
    %14 = arith.addf %13, %12 : vector<8x128xf32>
    %15 = arith.divf %13, %14 : vector<8x128xf32>
    %16 = arith.mulf %8, %15 : vector<8x128xf32>
    %c0_8 = arith.constant 0 : index
    %c0_9 = arith.constant 0 : index
    %17 = vector.load %arg26[%c0_8, %c0_9] : memref<8x64xf32, #tpu.memory_space<vmem>>, vector<8x64xf32>
    %18 = arith.truncf %16 : vector<8x128xf32> to vector<8x128xbf16>
    %c0_10 = arith.constant 0 : index
    %c0_11 = arith.constant 0 : index
    %19 = vector.load %arg17[%c0_10, %c0_11] : memref<128x64xbf16, #tpu.memory_space<vmem>>, vector<128x64xbf16>
    %cst_12 = arith.constant dense<0.000000e+00> : vector<8x64xf32>
    %20 = tpu.matmul %18, %19, %cst_12 {dimension_numbers = #tpu.dot_dimension_numbers<[1], [0], [0], [1], [0, 0, 1, 1], [], []>} : vector<8x128xbf16>, vector<128x64xbf16>, vector<8x64xf32> -> vector<8x64xf32>
    %21 = arith.addf %17, %20 : vector<8x64xf32>
    %c0_13 = arith.constant 0 : index
    %c0_14 = arith.constant 0 : index
    %22 = vector.load %arg26[%c0_13, %c0_14] : memref<8x64xf32, #tpu.memory_space<vmem>>, vector<8x64xf32>
    tpu.vector_store %arg26[%c0_13, %c0_14], %21 {strides = array<i32>} : memref<8x64xf32, #tpu.memory_space<vmem>>, vector<8x64xf32>,
    %c1_i32 = arith.constant 1 : i32
    %23 = arith.cmpi eq, %arg1, %c1_i32 : i32
    %24 = arith.extui %23 : i1 to i32
    %c0_i32_15 = arith.constant 0 : i32
    %25 = arith.cmpi ne, %24, %c0_i32_15 : i32
    scf.if %25 {
      %c0_16 = arith.constant 0 : index
      %c0_17 = arith.constant 0 : index
      %26 = vector.load %arg24[%c0_16, %c0_17] : memref<8x64xf32, #tpu.memory_space<vmem>>, vector<8x64xf32>
      %c0_18 = arith.constant 0 : index
      %c0_19 = arith.constant 0 : index
      %27 = vector.load %arg26[%c0_18, %c0_19] : memref<8x64xf32, #tpu.memory_space<vmem>>, vector<8x64xf32>
      %28 = arith.addf %26, %27 : vector<8x64xf32>
      %c0_20 = arith.constant 0 : index
      %c0_21 = arith.constant 0 : index
      %29 = vector.load %arg18[%c0_20, %c0_21] : memref<1x64xf32, #tpu.memory_space<vmem>>, vector<1x64xf32>
      %30 = vector.broadcast %29 : vector<1x64xf32> to vector<8x64xf32>
      %31 = arith.addf %28, %30 : vector<8x64xf32>
      %c0_22 = arith.constant 0 : index
      %c0_23 = arith.constant 0 : index
      %c0_24 = arith.constant 0 : index
      %32 = vector.load %arg19[%c0_22, %c0_23, %c0_24] : memref<1x8x64xf32, #tpu.memory_space<vmem>>, vector<1x8x64xf32>
      %33 = vector.shape_cast %32 : vector<1x8x64xf32> to vector<8x64xf32>
      %34 = vector.shape_cast %31 : vector<8x64xf32> to vector<1x8x64xf32>
      tpu.vector_store %arg19[%c0_22, %c0_23, %c0_24], %34 {strides = array<i32>} : memref<1x8x64xf32, #tpu.memory_space<vmem>>, vector<1x8x64xf32>,
    } else {
    }
    return
  }
  func.func @transform_0(%arg0: i32, %arg1: i32) -> (i32, i32, i32) {
    %c0_i32 = arith.constant 0 : i32
    %c0_i32_0 = arith.constant 0 : i32
    %c0_i32_1 = arith.constant 0 : i32
    return %arg0, %c0_i32, %c0_i32_0 : i32, i32, i32
  }
  func.func @transform_1(%arg0: i32, %arg1: i32) -> (i32, i32) {
    %c0_i32 = arith.constant 0 : i32
    %c0_i32_0 = arith.constant 0 : i32
    %c0_i32_1 = arith.constant 0 : i32
    return %c0_i32, %c0_i32_0 : i32, i32
  }
  func.func @transform_2(%arg0: i32, %arg1: i32) -> (i32, i32) {
    %c0_i32 = arith.constant 0 : i32
    %c0_i32_0 = arith.constant 0 : i32
    %c0_i32_1 = arith.constant 0 : i32
    return %c0_i32, %c0_i32_0 : i32, i32
  }
  func.func @transform_3(%arg0: i32, %arg1: i32) -> (i32, i32) {
    %c0_i32 = arith.constant 0 : i32
    %c0_i32_0 = arith.constant 0 : i32
    %c0_i32_1 = arith.constant 0 : i32
    return %c0_i32, %c0_i32_0 : i32, i32
  }
  func.func @transform_4(%arg0: i32, %arg1: i32) -> (i32, i32) {
    %c0_i32 = arith.constant 0 : i32
    %c0_i32_0 = arith.constant 0 : i32
    %c0_i32_1 = arith.constant 0 : i32
    return %c0_i32, %c0_i32_0 : i32, i32
  }
  func.func @transform_5(%arg0: i32, %arg1: i32) -> (i32, i32) {
    %c0_i32 = arith.constant 0 : i32
    %c0_i32_0 = arith.constant 0 : i32
    %c0_i32_1 = arith.constant 0 : i32
    return %c0_i32, %c0_i32_0 : i32, i32
  }
  func.func @transform_6(%arg0: i32, %arg1: i32) -> (i32, i32) {
    %c0_i32 = arith.constant 0 : i32
    %c0_i32_0 = arith.constant 0 : i32
    %c0_i32_1 = arith.constant 0 : i32
    return %c0_i32, %c0_i32_0 : i32, i32
  }
  func.func @transform_7(%arg0: i32, %arg1: i32) -> (i32, i32) {
    %c0_i32 = arith.constant 0 : i32
    %c0_i32_0 = arith.constant 0 : i32
    %c0_i32_1 = arith.constant 0 : i32
    return %c0_i32, %c0_i32_0 : i32, i32
  }
  func.func @transform_8(%arg0: i32, %arg1: i32) -> (i32, i32) {
    %c0_i32 = arith.constant 0 : i32
    %c0_i32_0 = arith.constant 0 : i32
    %c0_i32_1 = arith.constant 0 : i32
    return %c0_i32, %c0_i32_0 : i32, i32
  }
  func.func @transform_9(%arg0: i32, %arg1: i32) -> (i32, i32) {
    %c0_i32 = arith.constant 0 : i32
    %c0_i32_0 = arith.constant 0 : i32
    %c0_i32_1 = arith.constant 0 : i32
    return %c0_i32, %c0_i32_0 : i32, i32
  }
  func.func @transform_10(%arg0: i32, %arg1: i32) -> (i32, i32) {
    %c0_i32 = arith.constant 0 : i32
    %c0_i32_0 = arith.constant 0 : i32
    %c0_i32_1 = arith.constant 0 : i32
    return %c0_i32, %c0_i32_0 : i32, i32
  }
  func.func @transform_11(%arg0: i32, %arg1: i32) -> (i32, i32) {
    %c0_i32 = arith.constant 0 : i32
    %c0_i32_0 = arith.constant 0 : i32
    %c0_i32_1 = arith.constant 0 : i32
    return %c0_i32, %c0_i32_0 : i32, i32
  }
  func.func @transform_12(%arg0: i32, %arg1: i32) -> (i32, i32) {
    %c0_i32 = arith.constant 0 : i32
    %c0_i32_0 = arith.constant 0 : i32
    %c0_i32_1 = arith.constant 0 : i32
    return %c0_i32, %c0_i32_0 : i32, i32
  }
  func.func @transform_13(%arg0: i32, %arg1: i32) -> (i32, i32) {
    %c0_i32 = arith.constant 0 : i32
    %c0_i32_0 = arith.constant 0 : i32
    return %c0_i32, %arg1 : i32, i32
  }
  func.func @transform_14(%arg0: i32, %arg1: i32) -> (i32, i32) {
    %c0_i32 = arith.constant 0 : i32
    %c0_i32_0 = arith.constant 0 : i32
    return %c0_i32, %arg1 : i32, i32
  }
  func.func @transform_15(%arg0: i32, %arg1: i32) -> (i32, i32) {
    %c0_i32 = arith.constant 0 : i32
    %c0_i32_0 = arith.constant 0 : i32
    return %arg1, %c0_i32 : i32, i32
  }
  func.func @transform_16(%arg0: i32, %arg1: i32) -> (i32, i32) {
    %c0_i32 = arith.constant 0 : i32
    %c0_i32_0 = arith.constant 0 : i32
    %c0_i32_1 = arith.constant 0 : i32
    return %c0_i32, %c0_i32_0 : i32, i32
  }
  func.func @transform_17(%arg0: i32, %arg1: i32) -> (i32, i32, i32) {
    %c0_i32 = arith.constant 0 : i32
    %c0_i32_0 = arith.constant 0 : i32
    %c0_i32_1 = arith.constant 0 : i32
    return %arg0, %c0_i32, %c0_i32_0 : i32, i32, i32
  }
}

</mosaic_0001>

<llo_original>
// kernel: residual_attention_block.1
$region0: #{residual_attention_block.1}
  #allocation0 [shape = 'u32[]', space=smem, size = 0x4, offset = 0x4, fixed_abs, tag = 'smem constant byte address 0x4 - core index']
  #allocation1 [shape = 'u32[144,128]{1,0:T(1,128)}', space=vmem, size = 0x12000, scoped, tag = 'internal scratch']
  #allocation2 [shape = 'f32[8,64]{1,0:T(8,128)}', space=vmem, size = 0x1000, scoped, tag = 'scratch operand']
  #allocation3 [shape = 'f32[8,64]{1,0:T(8,128)}', space=vmem, size = 0x1000, scoped, tag = 'scratch operand']
  #allocation4 [shape = 'f32[8,64]{1,0:T(8,128)}', space=vmem, size = 0x1000, scoped, tag = 'scratch operand']
  #allocation5 [shape = 'f32[8,64]{1,0:T(8,128)}', space=vmem, size = 0x1000, scoped, tag = 'scratch operand']
  #allocation6 [shape = 'f32[8,64]{1,0:T(8,128)}', space=vmem, size = 0x1000, scoped, tag = 'scratch operand']
  #allocation7 [shape = 'bf16[8,64]{1,0:T(8,128)(2,1)}', space=vmem, size = 0x800, scoped, tag = 'scratch operand']
  #allocation8 [shape = 'f32[8,64]{1,0:T(8,128)}', space=vmem, size = 0x1000, scoped, tag = 'scratch operand']
  %s0 = inlined_call_operand.hbm [shape: f32[2,8,64], index: 0, kind: input, shape index: {}]
  %s1 = inlined_call_operand.hbm [shape: f32[1,64], index: 1, kind: input, shape index: {}]
  %s2 = inlined_call_operand.hbm [shape: f32[1,64], index: 2, kind: input, shape index: {}]
  %s3 = inlined_call_operand.hbm [shape: bf16[64,64], index: 3, kind: input, shape index: {}]
  %s4 = inlined_call_operand.hbm [shape: bf16[64,64], index: 4, kind: input, shape index: {}]
  %s5 = inlined_call_operand.hbm [shape: bf16[64,64], index: 5, kind: input, shape index: {}]
  %s6 = inlined_call_operand.hbm [shape: f32[1,64], index: 6, kind: input, shape index: {}]
  %s7 = inlined_call_operand.hbm [shape: f32[1,64], index: 7, kind: input, shape index: {}]
  %s8 = inlined_call_operand.hbm [shape: f32[1,64], index: 8, kind: input, shape index: {}]
  %s9 = inlined_call_operand.hbm [shape: bf16[64,64], index: 9, kind: input, shape index: {}]
  %s10 = inlined_call_operand.hbm [shape: f32[1,64], index: 10, kind: input, shape index: {}]
  %s11 = inlined_call_operand.hbm [shape: f32[1,64], index: 11, kind: input, shape index: {}]
  %s12 = inlined_call_operand.hbm [shape: f32[1,64], index: 12, kind: input, shape index: {}]
  %s13 = inlined_call_operand.hbm [shape: bf16[64,256], index: 13, kind: input, shape index: {}]
  %s14 = inlined_call_operand.hbm [shape: f32[1,256], index: 14, kind: input, shape index: {}]
  %s15 = inlined_call_operand.hbm [shape: bf16[256,64], index: 15, kind: input, shape index: {}]
  %s16 = inlined_call_operand.hbm [shape: f32[1,64], index: 16, kind: input, shape index: {}]
  %s17 = inlined_call_operand.hbm [shape: f32[2,8,64], index: 17, kind: output, shape index: {}]
  %s18 = sld [smem:[#allocation0]]
  $region177: #{residual_attention_block.1} parent=0
    _
  %s20 = ssub.s32 1, %s18
  %s21 = scalar_select 0, %s20, %s18
  $region1: #{residual_attention_block.1} parent=0
    #allocation9 [shape = 'u8[8192]{0}', space=vmem, size = 0x2000, scoped, tag = 'input window, operand 0']
    #allocation10 [shape = 's32[2]{0}', space=sflag, size = 0x8, scoped, tag = 'scoped memory for residual_attention_block.1']
    #allocation11 [shape = 's32[2]{0}', space=sflag, size = 0x8, scoped, tag = 'scoped memory for residual_attention_block.1']
    #allocation12 [shape = 'u8[512]{0}', space=vmem, size = 0x400, scoped, tag = 'input window, operand 1, single buffered']
    #allocation13 [shape = 's32[1]{0}', space=sflag, size = 0x4, scoped, tag = 'scoped memory for residual_attention_block.1']
    #allocation14 [shape = 'u8[512]{0}', space=vmem, size = 0x400, scoped, tag = 'input window, operand 2, single buffered']
    #allocation15 [shape = 'u8[16384]{0}', space=vmem, size = 0x4000, scoped, tag = 'input window, operand 3, single buffered']
    #allocation16 [shape = 's32[1]{0}', space=sflag, size = 0x4, scoped, tag = 'scoped memory for residual_attention_block.1']
    #allocation17 [shape = 'u8[16384]{0}', space=vmem, size = 0x4000, scoped, tag = 'input window, operand 4, single buffered']
    #allocation18 [shape = 'u8[16384]{0}', space=vmem, size = 0x4000, scoped, tag = 'input window, operand 5, single buffered']
    #allocation19 [shape = 's32[1]{0}', space=sflag, size = 0x4, scoped, tag = 'scoped memory for residual_attention_block.1']
    #allocation20 [shape = 'u8[512]{0}', space=vmem, size = 0x400, scoped, tag = 'input window, operand 6, single buffered']
    #allocation21 [shape = 'u8[512]{0}', space=vmem, size = 0x400, scoped, tag = 'input window, operand 7, single buffered']
    #allocation22 [shape = 's32[1]{0}', space=sflag, size = 0x4, scoped, tag = 'scoped memory for residual_attention_block.1']
    #allocation23 [shape = 'u8[512]{0}', space=vmem, size = 0x400, scoped, tag = 'input window, operand 8, single buffered']
    #allocation24 [shape = 'u8[16384]{0}', space=vmem, size = 0x4000, scoped, tag = 'input window, operand 9, single buffered']
    #allocation25 [shape = 's32[1]{0}', space=sflag, size = 0x4, scoped, tag = 'scoped memory for residual_attention_block.1']
    #allocation26 [shape = 'u8[512]{0}', space=vmem, size = 0x400, scoped, tag = 'input window, operand 10, single buffered']
    #allocation27 [shape = 'u8[512]{0}', space=vmem, size = 0x400, scoped, tag = 'input window, operand 11, single buffered']
    #allocation28 [shape = 's32[1]{0}', space=sflag, size = 0x4, scoped, tag = 'scoped memory for residual_attention_block.1']
    #allocation29 [shape = 'u8[512]{0}', space=vmem, size = 0x400, scoped, tag = 'input window, operand 12, single buffered']
    #allocation30 [shape = 'u8[32768]{0}', space=vmem, size = 0x8000, scoped, tag = 'input window, operand 13']
    #allocation31 [shape = 's32[2]{0}', space=sflag, size = 0x8, scoped, tag = 'scoped memory for residual_attention_block.1']
    #allocation32 [shape = 'u8[1024]{0}', space=vmem, size = 0x400, scoped, tag = 'input window, operand 14']
    #allocation33 [shape = 'u8[65536]{0}', space=vmem, size = 0x10000, scoped, tag = 'input window, operand 15']
    #allocation34 [shape = 's32[2]{0}', space=sflag, size = 0x8, scoped, tag = 'scoped memory for residual_attention_block.1']
    #allocation35 [shape = 'u8[512]{0}', space=vmem, size = 0x400, scoped, tag = 'input window, operand 16, single buffered']
    #allocation36 [shape = 'u8[8192]{0}', space=vmem, size = 0x2000, scoped, tag = 'output window, operand 0']
    %22 = vsyncpa [#allocation10], 0
    %s23 = scalar_lea.sflag [#allocation10], 1
    %24 = vsyncpa %s23, 0
    %25 = vsyncpa [#allocation13], 0
    %26 = vsyncpa [#allocation16], 0
    %27 = vsyncpa [#allocation19], 0
    %28 = vsyncpa [#allocation22], 0
    %29 = vsyncpa [#allocation25], 0
    %30 = vsyncpa [#allocation28], 0
    %31 = vsyncpa [#allocation31], 0
    %s32 = scalar_lea.sflag [#allocation31], 1
    %33 = vsyncpa %s32, 0
    %34 = vsyncpa [#allocation34], 0
    %s35 = scalar_lea.sflag [#allocation34], 1
    %36 = vsyncpa %s35, 0
    %37 = vsyncpa [#allocation11], 0
    %s38 = scalar_lea.sflag [#allocation11], 1
    %39 = vsyncpa %s38, 0
    loop: start=0, step=1, limit=6
    $region2: #{residual_attention_block.1} parent=1 // loop_pre_header
      _
    $region3: #{residual_attention_block.1} parent=1 // loop_header
      %s41 = sphi 0, %s45
      %p42 = scmp.ge.s32.totalorder %s41, 6
      %s48 = sphi 0, %s60
      %s49 = sphi 0, %s56
      %s50 = sphi 0, %s48
      %s51 = sphi 0, %s49
      %s52 = sphi 0, %s50
      %s53 = sphi 0, %s51
      %s63 = sphi 0, %s65
      %s66 = sphi 0, %s63
      %s67 = sphi 0, %s66
      %s83 = sphi 0, %s67
      %s87 = sphi 0, %s87
      %s89 = sphi 0, %s87
      %s90 = sphi 0, %s89
      %s104 = sphi 0, %s90
      %s108 = sphi 0, %s108
      %s110 = sphi 0, %s108
      %s111 = sphi 0, %s110
      %s125 = sphi 0, %s111
      %s129 = sphi 0, %s129
      %s131 = sphi 0, %s129
      %s132 = sphi 0, %s131
      %s146 = sphi 0, %s132
      %s150 = sphi 0, %s150
      %s152 = sphi 0, %s150
      %s153 = sphi 0, %s152
      %s167 = sphi 0, %s153
      %s171 = sphi 0, %s171
      %s173 = sphi 0, %s171
      %s174 = sphi 0, %s173
      %s188 = sphi 0, %s174
      %s192 = sphi 0, %s192
      %s194 = sphi 0, %s192
      %s195 = sphi 0, %s194
      %s209 = sphi 0, %s195
      %s213 = sphi 0, %s213
      %s215 = sphi 0, %s213
      %s216 = sphi 0, %s215
      %s230 = sphi 0, %s216
      %s234 = sphi 0, %s234
      %s236 = sphi 0, %s234
      %s237 = sphi 0, %s236
      %s251 = sphi 0, %s237
      %s255 = sphi 0, %s255
      %s257 = sphi 0, %s255
      %s258 = sphi 0, %s257
      %s272 = sphi 0, %s258
      %s276 = sphi 0, %s276
      %s278 = sphi 0, %s276
      %s279 = sphi 0, %s278
      %s293 = sphi 0, %s279
      %s297 = sphi 0, %s297
      %s299 = sphi 0, %s297
      %s300 = sphi 0, %s299
      %s314 = sphi 0, %s300
      %s318 = sphi 0, %s318
      %s320 = sphi 0, %s318
      %s321 = sphi 0, %s320
      %s335 = sphi 0, %s321
      %s341 = sphi 0, %s343
      %s344 = sphi 0, %s341
      %s345 = sphi 0, %s344
      %s361 = sphi 0, %s345
      %s367 = sphi 0, %s369
      %s370 = sphi 0, %s367
      %s371 = sphi 0, %s370
      %s387 = sphi 0, %s371
      %s393 = sphi 0, %s395
      %s396 = sphi 0, %s393
      %s397 = sphi 0, %s396
      %s413 = sphi 0, %s397
      %s417 = sphi 0, %s417
      %s419 = sphi 0, %s417
      %s420 = sphi 0, %s419
      %s434 = sphi 0, %s420
      %s440 = sphi 0, %s442
      %s443 = sphi 0, %s440
      %s444 = sphi 0, %s443
      %s460 = sphi 0, %s444
    $region4: #{residual_attention_block.1} parent=1 // loop_header_branch
      %44 = sbr.rel (%p42) target = $region8
    $region5: #{residual_attention_block.1} parent=1 // loop_body
      %s46 = ssub.s32 %s41, 1
      %s47 = ssub.s32 %s41, 2
      %s54 = sadd.s32 1, %s49
      %p55 = scmp.ge.s32.totalorder %s54, 2
      %s56 = scalar_select %p55, 0, %s54
      %s57 = sadd.s32 1, %s48
      %s58 = scalar_select %p55, %s57, %s48
      %p59 = scmp.ge.s32.totalorder %s58, 2
      %s60 = scalar_select %p59, 0, %s58
      %s61 = ssub.s32 %s48, %s60
      %p62 = scmp.eq.s32.totalorder %s61, 0
      %s64 = sadd.s32 %s63, 1
      %s65 = scalar_select %p62, %s63, %s64
      %p68 = pneg %p62
      %p69 = scmp.eq.s32.totalorder %s41, 3
      %p70 = por %p68, %p69
      %p71 = scmp.ne.s32.totalorder %s63, %s66
      %p72 = scmp.eq.s32.totalorder %s41, 0
      %p73 = por %p71, %p72
      %p74 = scmp.ne.s32.totalorder %s63, %s66
      %p75 = scmp.eq.s32.totalorder %s46, 3
      %p76 = por %p74, %p75
      %p77 = scmp.ne.s32.totalorder %s66, %s67
      %p78 = scmp.eq.s32.totalorder %s46, 0
      %p79 = por %p77, %p78
      %p80 = scmp.ne.s32.totalorder %s66, %s67
      %p81 = scmp.eq.s32.totalorder %s47, 3
      %p82 = por %p80, %p81
      %p84 = scmp.ne.s32.totalorder %s67, %s83
      %p85 = scmp.eq.s32.totalorder %s47, 0
      %p86 = por %p84, %p85
      %s88 = sadd.s32 %s87, 1
      %p91 = scmp.eq.s32.totalorder %s41, 3
      %p92 = scmp.ne.s32.totalorder %s87, %s89
      %p93 = scmp.eq.s32.totalorder %s41, 0
      %p94 = por %p92, %p93
      %p95 = scmp.ne.s32.totalorder %s87, %s89
      %p96 = scmp.eq.s32.totalorder %s46, 3
      %p97 = por %p95, %p96
      %p98 = scmp.ne.s32.totalorder %s89, %s90
      %p99 = scmp.eq.s32.totalorder %s46, 0
      %p100 = por %p98, %p99
      %p101 = scmp.ne.s32.totalorder %s89, %s90
      %p102 = scmp.eq.s32.totalorder %s47, 3
      %p103 = por %p101, %p102
      %p105 = scmp.ne.s32.totalorder %s90, %s104
      %p106 = scmp.eq.s32.totalorder %s47, 0
      %p107 = por %p105, %p106
      %s109 = sadd.s32 %s108, 1
      %p112 = scmp.eq.s32.totalorder %s41, 3
      %p113 = scmp.ne.s32.totalorder %s108, %s110
      %p114 = scmp.eq.s32.totalorder %s41, 0
      %p115 = por %p113, %p114
      %p116 = scmp.ne.s32.totalorder %s108, %s110
      %p117 = scmp.eq.s32.totalorder %s46, 3
      %p118 = por %p116, %p117
      %p119 = scmp.ne.s32.totalorder %s110, %s111
      %p120 = scmp.eq.s32.totalorder %s46, 0
      %p121 = por %p119, %p120
      %p122 = scmp.ne.s32.totalorder %s110, %s111
      %p123 = scmp.eq.s32.totalorder %s47, 3
      %p124 = por %p122, %p123
      %p126 = scmp.ne.s32.totalorder %s111, %s125
      %p127 = scmp.eq.s32.totalorder %s47, 0
      %p128 = por %p126, %p127
      %s130 = sadd.s32 %s129, 1
      %p133 = scmp.eq.s32.totalorder %s41, 3
      %p134 = scmp.ne.s32.totalorder %s129, %s131
      %p135 = scmp.eq.s32.totalorder %s41, 0
      %p136 = por %p134, %p135
      %p137 = scmp.ne.s32.totalorder %s129, %s131
      %p138 = scmp.eq.s32.totalorder %s46, 3
      %p139 = por %p137, %p138
      %p140 = scmp.ne.s32.totalorder %s131, %s132
      %p141 = scmp.eq.s32.totalorder %s46, 0
      %p142 = por %p140, %p141
      %p143 = scmp.ne.s32.totalorder %s131, %s132
      %p144 = scmp.eq.s32.totalorder %s47, 3
      %p145 = por %p143, %p144
      %p147 = scmp.ne.s32.totalorder %s132, %s146
      %p148 = scmp.eq.s32.totalorder %s47, 0
      %p149 = por %p147, %p148
      %s151 = sadd.s32 %s150, 1
      %p154 = scmp.eq.s32.totalorder %s41, 3
      %p155 = scmp.ne.s32.totalorder %s150, %s152
      %p156 = scmp.eq.s32.totalorder %s41, 0
      %p157 = por %p155, %p156
      %p158 = scmp.ne.s32.totalorder %s150, %s152
      %p159 = scmp.eq.s32.totalorder %s46, 3
      %p160 = por %p158, %p159
      %p161 = scmp.ne.s32.totalorder %s152, %s153
      %p162 = scmp.eq.s32.totalorder %s46, 0
      %p163 = por %p161, %p162
      %p164 = scmp.ne.s32.totalorder %s152, %s153
      %p165 = scmp.eq.s32.totalorder %s47, 3
      %p166 = por %p164, %p165
      %p168 = scmp.ne.s32.totalorder %s153, %s167
      %p169 = scmp.eq.s32.totalorder %s47, 0
      %p170 = por %p168, %p169
      %s172 = sadd.s32 %s171, 1
      %p175 = scmp.eq.s32.totalorder %s41, 3
      %p176 = scmp.ne.s32.totalorder %s171, %s173
      %p177 = scmp.eq.s32.totalorder %s41, 0
      %p178 = por %p176, %p177
      %p179 = scmp.ne.s32.totalorder %s171, %s173
      %p180 = scmp.eq.s32.totalorder %s46, 3
      %p181 = por %p179, %p180
      %p182 = scmp.ne.s32.totalorder %s173, %s174
      %p183 = scmp.eq.s32.totalorder %s46, 0
      %p184 = por %p182, %p183
      %p185 = scmp.ne.s32.totalorder %s173, %s174
      %p186 = scmp.eq.s32.totalorder %s47, 3
      %p187 = por %p185, %p186
      %p189 = scmp.ne.s32.totalorder %s174, %s188
      %p190 = scmp.eq.s32.totalorder %s47, 0
      %p191 = por %p189, %p190
      %s193 = sadd.s32 %s192, 1
      %p196 = scmp.eq.s32.totalorder %s41, 3
      %p197 = scmp.ne.s32.totalorder %s192, %s194
      %p198 = scmp.eq.s32.totalorder %s41, 0
      %p199 = por %p197, %p198
      %p200 = scmp.ne.s32.totalorder %s192, %s194
      %p201 = scmp.eq.s32.totalorder %s46, 3
      %p202 = por %p200, %p201
      %p203 = scmp.ne.s32.totalorder %s194, %s195
      %p204 = scmp.eq.s32.totalorder %s46, 0
      %p205 = por %p203, %p204
      %p206 = scmp.ne.s32.totalorder %s194, %s195
      %p207 = scmp.eq.s32.totalorder %s47, 3
      %p208 = por %p206, %p207
      %p210 = scmp.ne.s32.totalorder %s195, %s209
      %p211 = scmp.eq.s32.totalorder %s47, 0
      %p212 = por %p210, %p211
      %s214 = sadd.s32 %s213, 1
      %p217 = scmp.eq.s32.totalorder %s41, 3
      %p218 = scmp.ne.s32.totalorder %s213, %s215
      %p219 = scmp.eq.s32.totalorder %s41, 0
      %p220 = por %p218, %p219
      %p221 = scmp.ne.s32.totalorder %s213, %s215
      %p222 = scmp.eq.s32.totalorder %s46, 3
      %p223 = por %p221, %p222
      %p224 = scmp.ne.s32.totalorder %s215, %s216
      %p225 = scmp.eq.s32.totalorder %s46, 0
      %p226 = por %p224, %p225
      %p227 = scmp.ne.s32.totalorder %s215, %s216
      %p228 = scmp.eq.s32.totalorder %s47, 3
      %p229 = por %p227, %p228
      %p231 = scmp.ne.s32.totalorder %s216, %s230
      %p232 = scmp.eq.s32.totalorder %s47, 0
      %p233 = por %p231, %p232
      %s235 = sadd.s32 %s234, 1
      %p238 = scmp.eq.s32.totalorder %s41, 3
      %p239 = scmp.ne.s32.totalorder %s234, %s236
      %p240 = scmp.eq.s32.totalorder %s41, 0
      %p241 = por %p239, %p240
      %p242 = scmp.ne.s32.totalorder %s234, %s236
      %p243 = scmp.eq.s32.totalorder %s46, 3
      %p244 = por %p242, %p243
      %p245 = scmp.ne.s32.totalorder %s236, %s237
      %p246 = scmp.eq.s32.totalorder %s46, 0
      %p247 = por %p245, %p246
      %p248 = scmp.ne.s32.totalorder %s236, %s237
      %p249 = scmp.eq.s32.totalorder %s47, 3
      %p250 = por %p248, %p249
      %p252 = scmp.ne.s32.totalorder %s237, %s251
      %p253 = scmp.eq.s32.totalorder %s47, 0
      %p254 = por %p252, %p253
      %s256 = sadd.s32 %s255, 1
      %p259 = scmp.eq.s32.totalorder %s41, 3
      %p260 = scmp.ne.s32.totalorder %s255, %s257
      %p261 = scmp.eq.s32.totalorder %s41, 0
      %p262 = por %p260, %p261
      %p263 = scmp.ne.s32.totalorder %s255, %s257
      %p264 = scmp.eq.s32.totalorder %s46, 3
      %p265 = por %p263, %p264
      %p266 = scmp.ne.s32.totalorder %s257, %s258
      %p267 = scmp.eq.s32.totalorder %s46, 0
      %p268 = por %p266, %p267
      %p269 = scmp.ne.s32.totalorder %s257, %s258
      %p270 = scmp.eq.s32.totalorder %s47, 3
      %p271 = por %p269, %p270
      %p273 = scmp.ne.s32.totalorder %s258, %s272
      %p274 = scmp.eq.s32.totalorder %s47, 0
      %p275 = por %p273, %p274
      %s277 = sadd.s32 %s276, 1
      %p280 = scmp.eq.s32.totalorder %s41, 3
      %p281 = scmp.ne.s32.totalorder %s276, %s278
      %p282 = scmp.eq.s32.totalorder %s41, 0
      %p283 = por %p281, %p282
      %p284 = scmp.ne.s32.totalorder %s276, %s278
      %p285 = scmp.eq.s32.totalorder %s46, 3
      %p286 = por %p284, %p285
      %p287 = scmp.ne.s32.totalorder %s278, %s279
      %p288 = scmp.eq.s32.totalorder %s46, 0
      %p289 = por %p287, %p288
      %p290 = scmp.ne.s32.totalorder %s278, %s279
      %p291 = scmp.eq.s32.totalorder %s47, 3
      %p292 = por %p290, %p291
      %p294 = scmp.ne.s32.totalorder %s279, %s293
      %p295 = scmp.eq.s32.totalorder %s47, 0
      %p296 = por %p294, %p295
      %s298 = sadd.s32 %s297, 1
      %p301 = scmp.eq.s32.totalorder %s41, 3
      %p302 = scmp.ne.s32.totalorder %s297, %s299
      %p303 = scmp.eq.s32.totalorder %s41, 0
      %p304 = por %p302, %p303
      %p305 = scmp.ne.s32.totalorder %s297, %s299
      %p306 = scmp.eq.s32.totalorder %s46, 3
      %p307 = por %p305, %p306
      %p308 = scmp.ne.s32.totalorder %s299, %s300
      %p309 = scmp.eq.s32.totalorder %s46, 0
      %p310 = por %p308, %p309
      %p311 = scmp.ne.s32.totalorder %s299, %s300
      %p312 = scmp.eq.s32.totalorder %s47, 3
      %p313 = por %p311, %p312
      %p315 = scmp.ne.s32.totalorder %s300, %s314
      %p316 = scmp.eq.s32.totalorder %s47, 0
      %p317 = por %p315, %p316
      %s319 = sadd.s32 %s318, 1
      %p322 = scmp.eq.s32.totalorder %s41, 3
      %p323 = scmp.ne.s32.totalorder %s318, %s320
      %p324 = scmp.eq.s32.totalorder %s41, 0
      %p325 = por %p323, %p324
      %p326 = scmp.ne.s32.totalorder %s318, %s320
      %p327 = scmp.eq.s32.totalorder %s46, 3
      %p328 = por %p326, %p327
      %p329 = scmp.ne.s32.totalorder %s320, %s321
      %p330 = scmp.eq.s32.totalorder %s46, 0
      %p331 = por %p329, %p330
      %p332 = scmp.ne.s32.totalorder %s320, %s321
      %p333 = scmp.eq.s32.totalorder %s47, 3
      %p334 = por %p332, %p333
      %p336 = scmp.ne.s32.totalorder %s321, %s335
      %p337 = scmp.eq.s32.totalorder %s47, 0
      %p338 = por %p336, %p337
      %s339 = ssub.s32 %s49, %s56
      %p340 = scmp.eq.s32.totalorder %s339, 0
      %s342 = sadd.s32 %s341, 1
      %s343 = scalar_select %p340, %s341, %s342
      %p346 = pneg %p340
      %p347 = scmp.eq.s32.totalorder %s41, 3
      %p348 = por %p346, %p347
      %p349 = scmp.ne.s32.totalorder %s341, %s344
      %p350 = scmp.eq.s32.totalorder %s41, 0
      %p351 = por %p349, %p350
      %p352 = scmp.ne.s32.totalorder %s341, %s344
      %p353 = scmp.eq.s32.totalorder %s46, 3
      %p354 = por %p352, %p353
      %p355 = scmp.ne.s32.totalorder %s344, %s345
      %p356 = scmp.eq.s32.totalorder %s46, 0
      %p357 = por %p355, %p356
      %p358 = scmp.ne.s32.totalorder %s344, %s345
      %p359 = scmp.eq.s32.totalorder %s47, 3
      %p360 = por %p358, %p359
      %p362 = scmp.ne.s32.totalorder %s345, %s361
      %p363 = scmp.eq.s32.totalorder %s47, 0
      %p364 = por %p362, %p363
      %s365 = ssub.s32 %s49, %s56
      %p366 = scmp.eq.s32.totalorder %s365, 0
      %s368 = sadd.s32 %s367, 1
      %s369 = scalar_select %p366, %s367, %s368
      %p372 = pneg %p366
      %p373 = scmp.eq.s32.totalorder %s41, 3
      %p374 = por %p372, %p373
      %p375 = scmp.ne.s32.totalorder %s367, %s370
      %p376 = scmp.eq.s32.totalorder %s41, 0
      %p377 = por %p375, %p376
      %p378 = scmp.ne.s32.totalorder %s367, %s370
      %p379 = scmp.eq.s32.totalorder %s46, 3
      %p380 = por %p378, %p379
      %p381 = scmp.ne.s32.totalorder %s370, %s371
      %p382 = scmp.eq.s32.totalorder %s46, 0
      %p383 = por %p381, %p382
      %p384 = scmp.ne.s32.totalorder %s370, %s371
      %p385 = scmp.eq.s32.totalorder %s47, 3
      %p386 = por %p384, %p385
      %p388 = scmp.ne.s32.totalorder %s371, %s387
      %p389 = scmp.eq.s32.totalorder %s47, 0
      %p390 = por %p388, %p389
      %s391 = ssub.s32 %s49, %s56
      %p392 = scmp.eq.s32.totalorder %s391, 0
      %s394 = sadd.s32 %s393, 1
      %s395 = scalar_select %p392, %s393, %s394
      %p398 = pneg %p392
      %p399 = scmp.eq.s32.totalorder %s41, 3
      %p400 = por %p398, %p399
      %p401 = scmp.ne.s32.totalorder %s393, %s396
      %p402 = scmp.eq.s32.totalorder %s41, 0
      %p403 = por %p401, %p402
      %p404 = scmp.ne.s32.totalorder %s393, %s396
      %p405 = scmp.eq.s32.totalorder %s46, 3
      %p406 = por %p404, %p405
      %p407 = scmp.ne.s32.totalorder %s396, %s397
      %p408 = scmp.eq.s32.totalorder %s46, 0
      %p409 = por %p407, %p408
      %p410 = scmp.ne.s32.totalorder %s396, %s397
      %p411 = scmp.eq.s32.totalorder %s47, 3
      %p412 = por %p410, %p411
      %p414 = scmp.ne.s32.totalorder %s397, %s413
      %p415 = scmp.eq.s32.totalorder %s47, 0
      %p416 = por %p414, %p415
      %s418 = sadd.s32 %s417, 1
      %p421 = scmp.eq.s32.totalorder %s41, 3
      %p422 = scmp.ne.s32.totalorder %s417, %s419
      %p423 = scmp.eq.s32.totalorder %s41, 0
      %p424 = por %p422, %p423
      %p425 = scmp.ne.s32.totalorder %s417, %s419
      %p426 = scmp.eq.s32.totalorder %s46, 3
      %p427 = por %p425, %p426
      %p428 = scmp.ne.s32.totalorder %s419, %s420
      %p429 = scmp.eq.s32.totalorder %s46, 0
      %p430 = por %p428, %p429
      %p431 = scmp.ne.s32.totalorder %s419, %s420
      %p432 = scmp.eq.s32.totalorder %s47, 3
      %p433 = por %p431, %p432
      %p435 = scmp.ne.s32.totalorder %s420, %s434
      %p436 = scmp.eq.s32.totalorder %s47, 0
      %p437 = por %p435, %p436
      %s438 = ssub.s32 %s48, %s60
      %p439 = scmp.eq.s32.totalorder %s438, 0
      %s441 = sadd.s32 %s440, 1
      %s442 = scalar_select %p439, %s440, %s441
      %p445 = pneg %p439
      %p446 = scmp.eq.s32.totalorder %s41, 3
      %p447 = por %p445, %p446
      %p448 = scmp.ne.s32.totalorder %s440, %s443
      %p449 = scmp.eq.s32.totalorder %s41, 0
      %p450 = por %p448, %p449
      %p451 = scmp.ne.s32.totalorder %s440, %s443
      %p452 = scmp.eq.s32.totalorder %s46, 3
      %p453 = por %p451, %p452
      %p454 = scmp.ne.s32.totalorder %s443, %s444
      %p455 = scmp.eq.s32.totalorder %s46, 0
      %p456 = por %p454, %p455
      %p457 = scmp.ne.s32.totalorder %s443, %s444
      %p458 = scmp.eq.s32.totalorder %s47, 3
      %p459 = por %p457, %p458
      %p461 = scmp.ne.s32.totalorder %s444, %s460
      %p462 = scmp.eq.s32.totalorder %s47, 0
      %p463 = por %p461, %p462
      %p464 = scmp.le.s32.totalorder 1, %s41
      %p465 = scmp.lt.s32.totalorder %s41, 5
      %p466 = pnand %p464, %p465
      %p467 = pneg %p466
      // Predicated region
      $region9: #{residual_attention_block.1} parent=5 // pred_check
        _
      $region10: #{residual_attention_block.1} parent=5 // pred_check_branch
        %469 = sbr.rel (%p466) target = $region12
      $region11: #{residual_attention_block.1} parent=5 // pred_region
        %s470 = ssub.s32 %s41, 1
        // Predicated region
        $region13: #{residual_attention_block.1} parent=11 // pred_check
          %p471 = pneg %p100
        $region14: #{residual_attention_block.1} parent=11 // pred_check_branch
          %473 = sbr.rel (%p471) target = $region16
        $region15: #{residual_attention_block.1} parent=11 // pred_region
          %s475 = ssub.s32 16, 16
          %476 = vsyncadd [#allocation13], %s475
          %s478 = sshll.u32 [#allocation12], 4
          %s479 = int_to_ptr.vmem [resolvable:$true] %s478
          %481 = dma.hbm_to_vmem [thread:$0]  %s1, 16, %s479, [#allocation13]
        $region16: #{residual_attention_block.1} parent=11 // pred_fallthru
          _
        // Predicated region
        $region17: #{residual_attention_block.1} parent=11 // pred_check
          %p482 = pneg %p121
        $region18: #{residual_attention_block.1} parent=11 // pred_check_branch
          %484 = sbr.rel (%p482) target = $region20
        $region19: #{residual_attention_block.1} parent=11 // pred_region
          %s486 = ssub.s32 16, 16
          %487 = vsyncadd [#allocation13], %s486
          %s489 = sshll.u32 [#allocation14], 4
          %s490 = int_to_ptr.vmem [resolvable:$true] %s489
          %492 = dma.hbm_to_vmem [thread:$0]  %s2, 16, %s490, [#allocation13]
        $region20: #{residual_attention_block.1} parent=11 // pred_fallthru
          _
        // Predicated region
        $region21: #{residual_attention_block.1} parent=11 // pred_check
          %p493 = pneg %p142
        $region22: #{residual_attention_block.1} parent=11 // pred_check_branch
          %495 = sbr.rel (%p493) target = $region24
        $region23: #{residual_attention_block.1} parent=11 // pred_region
          %s497 = ssub.s32 512, 512
          %498 = vsyncadd [#allocation16], %s497
          %s499 = sshll.u32 [#allocation15], 4
          %s500 = int_to_ptr.vmem [resolvable:$true] %s499
          %505 = dma.hbm_to_vmem [thread:$0]  %s3, 512, %s500, [#allocation16], 64, 64, 4
        $region24: #{residual_attention_block.1} parent=11 // pred_fallthru
          _
        // Predicated region
        $region25: #{residual_attention_block.1} parent=11 // pred_check
          %p506 = pneg %p163
        $region26: #{residual_attention_block.1} parent=11 // pred_check_branch
          %508 = sbr.rel (%p506) target = $region28
        $region27: #{residual_attention_block.1} parent=11 // pred_region
          %s510 = ssub.s32 512, 512
          %511 = vsyncadd [#allocation16], %s510
          %s512 = sshll.u32 [#allocation17], 4
          %s513 = int_to_ptr.vmem [resolvable:$true] %s512
          %518 = dma.hbm_to_vmem [thread:$0]  %s4, 512, %s513, [#allocation16], 64, 64, 4
        $region28: #{residual_attention_block.1} parent=11 // pred_fallthru
          _
        // Predicated region
        $region29: #{residual_attention_block.1} parent=11 // pred_check
          %p519 = pneg %p184
        $region30: #{residual_attention_block.1} parent=11 // pred_check_branch
          %521 = sbr.rel (%p519) target = $region32
        $region31: #{residual_attention_block.1} parent=11 // pred_region
          %s523 = ssub.s32 512, 512
          %524 = vsyncadd [#allocation19], %s523
          %s525 = sshll.u32 [#allocation18], 4
          %s526 = int_to_ptr.vmem [resolvable:$true] %s525
          %531 = dma.hbm_to_vmem [thread:$0]  %s5, 512, %s526, [#allocation19], 64, 64, 4
        $region32: #{residual_attention_block.1} parent=11 // pred_fallthru
          _
        // Predicated region
        $region33: #{residual_attention_block.1} parent=11 // pred_check
          %p532 = pneg %p205
        $region34: #{residual_attention_block.1} parent=11 // pred_check_branch
          %534 = sbr.rel (%p532) target = $region36
        $region35: #{residual_attention_block.1} parent=11 // pred_region
          %s536 = ssub.s32 16, 16
          %537 = vsyncadd [#allocation19], %s536
          %s539 = sshll.u32 [#allocation20], 4
          %s540 = int_to_ptr.vmem [resolvable:$true] %s539
          %542 = dma.hbm_to_vmem [thread:$0]  %s6, 16, %s540, [#allocation19]
        $region36: #{residual_attention_block.1} parent=11 // pred_fallthru
          _
        // Predicated region
        $region37: #{residual_attention_block.1} parent=11 // pred_check
          %p543 = pneg %p226
        $region38: #{residual_attention_block.1} parent=11 // pred_check_branch
          %545 = sbr.rel (%p543) target = $region40
        $region39: #{residual_attention_block.1} parent=11 // pred_region
          %s547 = ssub.s32 16, 16
          %548 = vsyncadd [#allocation22], %s547
          %s550 = sshll.u32 [#allocation21], 4
          %s551 = int_to_ptr.vmem [resolvable:$true] %s550
          %553 = dma.hbm_to_vmem [thread:$0]  %s7, 16, %s551, [#allocation22]
        $region40: #{residual_attention_block.1} parent=11 // pred_fallthru
          _
        // Predicated region
        $region41: #{residual_attention_block.1} parent=11 // pred_check
          %p554 = pneg %p247
        $region42: #{residual_attention_block.1} parent=11 // pred_check_branch
          %556 = sbr.rel (%p554) target = $region44
        $region43: #{residual_attention_block.1} parent=11 // pred_region
          %s558 = ssub.s32 16, 16
          %559 = vsyncadd [#allocation22], %s558
          %s561 = sshll.u32 [#allocation23], 4
          %s562 = int_to_ptr.vmem [resolvable:$true] %s561
          %564 = dma.hbm_to_vmem [thread:$0]  %s8, 16, %s562, [#allocation22]
        $region44: #{residual_attention_block.1} parent=11 // pred_fallthru
          _
        // Predicated region
        $region45: #{residual_attention_block.1} parent=11 // pred_check
          %p565 = pneg %p268
        $region46: #{residual_attention_block.1} parent=11 // pred_check_branch
          %567 = sbr.rel (%p565) target = $region48
        $region47: #{residual_attention_block.1} parent=11 // pred_region
          %s569 = ssub.s32 512, 512
          %570 = vsyncadd [#allocation25], %s569
          %s571 = sshll.u32 [#allocation24], 4
          %s572 = int_to_ptr.vmem [resolvable:$true] %s571
          %577 = dma.hbm_to_vmem [thread:$0]  %s9, 512, %s572, [#allocation25], 64, 64, 4
        $region48: #{residual_attention_block.1} parent=11 // pred_fallthru
          _
        // Predicated region
        $region49: #{residual_attention_block.1} parent=11 // pred_check
          %p578 = pneg %p289
        $region50: #{residual_attention_block.1} parent=11 // pred_check_branch
          %580 = sbr.rel (%p578) target = $region52
        $region51: #{residual_attention_block.1} parent=11 // pred_region
          %s582 = ssub.s32 16, 16
          %583 = vsyncadd [#allocation25], %s582
          %s585 = sshll.u32 [#allocation26], 4
          %s586 = int_to_ptr.vmem [resolvable:$true] %s585
          %588 = dma.hbm_to_vmem [thread:$0]  %s10, 16, %s586, [#allocation25]
        $region52: #{residual_attention_block.1} parent=11 // pred_fallthru
          _
        // Predicated region
        $region53: #{residual_attention_block.1} parent=11 // pred_check
          %p589 = pneg %p310
        $region54: #{residual_attention_block.1} parent=11 // pred_check_branch
          %591 = sbr.rel (%p589) target = $region56
        $region55: #{residual_attention_block.1} parent=11 // pred_region
          %s593 = ssub.s32 16, 16
          %594 = vsyncadd [#allocation28], %s593
          %s596 = sshll.u32 [#allocation27], 4
          %s597 = int_to_ptr.vmem [resolvable:$true] %s596
          %599 = dma.hbm_to_vmem [thread:$0]  %s11, 16, %s597, [#allocation28]
        $region56: #{residual_attention_block.1} parent=11 // pred_fallthru
          _
        // Predicated region
        $region57: #{residual_attention_block.1} parent=11 // pred_check
          %p600 = pneg %p331
        $region58: #{residual_attention_block.1} parent=11 // pred_check_branch
          %602 = sbr.rel (%p600) target = $region60
        $region59: #{residual_attention_block.1} parent=11 // pred_region
          %s604 = ssub.s32 16, 16
          %605 = vsyncadd [#allocation28], %s604
          %s607 = sshll.u32 [#allocation29], 4
          %s608 = int_to_ptr.vmem [resolvable:$true] %s607
          %610 = dma.hbm_to_vmem [thread:$0]  %s12, 16, %s608, [#allocation28]
        $region60: #{residual_attention_block.1} parent=11 // pred_fallthru
          _
        // Predicated region
        $region61: #{residual_attention_block.1} parent=11 // pred_check
          %p611 = pneg %p430
        $region62: #{residual_attention_block.1} parent=11 // pred_check_branch
          %613 = sbr.rel (%p611) target = $region64
        $region63: #{residual_attention_block.1} parent=11 // pred_region
          %s615 = ssub.s32 16, 16
          %616 = vsyncadd [#allocation34], %s615
          %s618 = sshll.u32 [#allocation35], 4
          %s619 = int_to_ptr.vmem [resolvable:$true] %s618
          %621 = dma.hbm_to_vmem [thread:$0]  %s16, 16, %s619, [#allocation34]
        $region64: #{residual_attention_block.1} parent=11 // pred_fallthru
          _
      $region12: #{residual_attention_block.1} parent=5 // pred_fallthru
        _
      %p622 = scmp.lt.s32.totalorder %s41, 4
      // Predicated region
      $region65: #{residual_attention_block.1} parent=5 // pred_check
        %p623 = pneg %p622
      $region66: #{residual_attention_block.1} parent=5 // pred_check_branch
        %625 = sbr.rel (%p623) target = $region68
      $region67: #{residual_attention_block.1} parent=5 // pred_region
        // Predicated region
        $region69: #{residual_attention_block.1} parent=67 // pred_check
          %p626 = pneg %p73
        $region70: #{residual_attention_block.1} parent=67 // pred_check_branch
          %628 = sbr.rel (%p626) target = $region72
        $region71: #{residual_attention_block.1} parent=67 // pred_region
          %s629 = sand.u32 %s63, 1
          %s630 = scalar_lea.sflag [#allocation10], %s629
          %s631 = sand.u32 %s63, 1
          %s632 = smul.addr %s631, 8
          %s633 = scalar_lea.vmem [#allocation9], %s632
          %s635 = ssub.s32 128, 128
          %636 = vsyncadd %s630, %s635
          %s637 = smul.addr %s48, 128
          %s638 = scalar_lea.hbm %s0, %s637
          %s640 = sshll.u32 %s633, 4
          %s641 = int_to_ptr.vmem [resolvable:$true] %s640
          %643 = dma.hbm_to_vmem [thread:$0]  %s638, 128, %s641, %s630
        $region72: #{residual_attention_block.1} parent=67 // pred_fallthru
          _
        // Predicated region
        $region73: #{residual_attention_block.1} parent=67 // pred_check
          %p644 = pneg %p351
        $region74: #{residual_attention_block.1} parent=67 // pred_check_branch
          %646 = sbr.rel (%p644) target = $region76
        $region75: #{residual_attention_block.1} parent=67 // pred_region
          %s647 = sand.u32 %s41, 1
          %s648 = scalar_lea.sflag [#allocation31], %s647
          %s649 = sand.u32 %s341, 1
          %s650 = smul.addr %s649, 32
          %s651 = scalar_lea.vmem [#allocation30], %s650
          %s653 = ssub.s32 512, 512
          %654 = vsyncadd %s648, %s653
          %s655 = smul.addr %s49, 64
          %s656 = scalar_lea.hbm %s13, %s655
          %s657 = sshll.u32 %s651, 4
          %s658 = int_to_ptr.vmem [resolvable:$true] %s657
          %663 = dma.hbm_to_vmem [thread:$0]  %s656, 512, %s658, %s648, 128, 64, 4
        $region76: #{residual_attention_block.1} parent=67 // pred_fallthru
          _
        // Predicated region
        $region77: #{residual_attention_block.1} parent=67 // pred_check
          %p664 = pneg %p377
        $region78: #{residual_attention_block.1} parent=67 // pred_check_branch
          %666 = sbr.rel (%p664) target = $region80
        $region79: #{residual_attention_block.1} parent=67 // pred_region
          %s667 = sand.u32 %s41, 1
          %s668 = scalar_lea.sflag [#allocation31], %s667
          %s669 = sand.u32 %s367, 1
          %s670 = scalar_lea.vmem [#allocation32], %s669
          %s672 = ssub.s32 16, 16
          %673 = vsyncadd %s668, %s672
          %s674 = smul.addr %s49, 16
          %s675 = scalar_lea.hbm %s14, %s674
          %s677 = sshll.u32 %s670, 4
          %s678 = int_to_ptr.vmem [resolvable:$true] %s677
          %680 = dma.hbm_to_vmem [thread:$0]  %s675, 16, %s678, %s668
        $region80: #{residual_attention_block.1} parent=67 // pred_fallthru
          _
        // Predicated region
        $region81: #{residual_attention_block.1} parent=67 // pred_check
          %p681 = pneg %p403
        $region82: #{residual_attention_block.1} parent=67 // pred_check_branch
          %683 = sbr.rel (%p681) target = $region84
        $region83: #{residual_attention_block.1} parent=67 // pred_region
          %s684 = sand.u32 %s41, 1
          %s685 = scalar_lea.sflag [#allocation34], %s684
          %s686 = sand.u32 %s393, 1
          %s687 = smul.addr %s686, 64
          %s688 = scalar_lea.vmem [#allocation33], %s687
          %s689 = smul.u32 16, %s49
          %s691 = ssub.s32 1024, 1024
          %692 = vsyncadd %s685, %s691
          %s693 = smul.addr %s689, 64
          %s694 = scalar_lea.hbm %s15, %s693
          %s695 = sshll.u32 %s688, 4
          %s696 = int_to_ptr.vmem [resolvable:$true] %s695
          %701 = dma.hbm_to_vmem [thread:$0]  %s694, 1024, %s696, %s685, 64, 64, 4
        $region84: #{residual_attention_block.1} parent=67 // pred_fallthru
          _
      $region68: #{residual_attention_block.1} parent=5 // pred_fallthru
        _
      %p702 = scmp.le.s32.totalorder 1, %s41
      %p703 = scmp.lt.s32.totalorder %s41, 5
      %p704 = pnand %p702, %p703
      %p705 = pneg %p704
      // Predicated region
      $region85: #{residual_attention_block.1} parent=5 // pred_check
        _
      $region86: #{residual_attention_block.1} parent=5 // pred_check_branch
        %707 = sbr.rel (%p704) target = $region88
      $region87: #{residual_attention_block.1} parent=5 // pred_region
        %s708 = ssub.s32 %s41, 1
        %s709 = sand.u32 %s66, 1
        %s710 = scalar_lea.sflag [#allocation10], %s709
        %s711 = sand.u32 %s66, 1
        %s712 = smul.addr %s711, 8
        %s713 = scalar_lea.vmem [#allocation9], %s712
        // Predicated region
        $region89: #{residual_attention_block.1} parent=87 // pred_check
          %p714 = pneg %p79
        $region90: #{residual_attention_block.1} parent=87 // pred_check_branch
          %716 = sbr.rel (%p714) target = $region92
        $region91: #{residual_attention_block.1} parent=87 // pred_region
          %717 = dma.done %s710, 128
        $region92: #{residual_attention_block.1} parent=87 // pred_fallthru
          _
        // Predicated region
        $region93: #{residual_attention_block.1} parent=87 // pred_check
          %p718 = pneg %p100
        $region94: #{residual_attention_block.1} parent=87 // pred_check_branch
          %720 = sbr.rel (%p718) target = $region96
        $region95: #{residual_attention_block.1} parent=87 // pred_region
          %721 = dma.done [#allocation13], 16
        $region96: #{residual_attention_block.1} parent=87 // pred_fallthru
          _
        // Predicated region
        $region97: #{residual_attention_block.1} parent=87 // pred_check
          %p722 = pneg %p121
        $region98: #{residual_attention_block.1} parent=87 // pred_check_branch
          %724 = sbr.rel (%p722) target = $region100
        $region99: #{residual_attention_block.1} parent=87 // pred_region
          %725 = dma.done [#allocation13], 16
        $region100: #{residual_attention_block.1} parent=87 // pred_fallthru
          _
        // Predicated region
        $region101: #{residual_attention_block.1} parent=87 // pred_check
          %p726 = pneg %p142
        $region102: #{residual_attention_block.1} parent=87 // pred_check_branch
          %728 = sbr.rel (%p726) target = $region104
        $region103: #{residual_attention_block.1} parent=87 // pred_region
          %729 = dma.done [#allocation16], 512
        $region104: #{residual_attention_block.1} parent=87 // pred_fallthru
          _
        // Predicated region
        $region105: #{residual_attention_block.1} parent=87 // pred_check
          %p730 = pneg %p163
        $region106: #{residual_attention_block.1} parent=87 // pred_check_branch
          %732 = sbr.rel (%p730) target = $region108
        $region107: #{residual_attention_block.1} parent=87 // pred_region
          %733 = dma.done [#allocation16], 512
        $region108: #{residual_attention_block.1} parent=87 // pred_fallthru
          _
        // Predicated region
        $region109: #{residual_attention_block.1} parent=87 // pred_check
          %p734 = pneg %p184
        $region110: #{residual_attention_block.1} parent=87 // pred_check_branch
          %736 = sbr.rel (%p734) target = $region112
        $region111: #{residual_attention_block.1} parent=87 // pred_region
          %737 = dma.done [#allocation19], 512
        $region112: #{residual_attention_block.1} parent=87 // pred_fallthru
          _
        // Predicated region
        $region113: #{residual_attention_block.1} parent=87 // pred_check
          %p738 = pneg %p205
        $region114: #{residual_attention_block.1} parent=87 // pred_check_branch
          %740 = sbr.rel (%p738) target = $region116
        $region115: #{residual_attention_block.1} parent=87 // pred_region
          %741 = dma.done [#allocation19], 16
        $region116: #{residual_attention_block.1} parent=87 // pred_fallthru
          _
        // Predicated region
        $region117: #{residual_attention_block.1} parent=87 // pred_check
          %p742 = pneg %p226
        $region118: #{residual_attention_block.1} parent=87 // pred_check_branch
          %744 = sbr.rel (%p742) target = $region120
        $region119: #{residual_attention_block.1} parent=87 // pred_region
          %745 = dma.done [#allocation22], 16
        $region120: #{residual_attention_block.1} parent=87 // pred_fallthru
          _
        // Predicated region
        $region121: #{residual_attention_block.1} parent=87 // pred_check
          %p746 = pneg %p247
        $region122: #{residual_attention_block.1} parent=87 // pred_check_branch
          %748 = sbr.rel (%p746) target = $region124
        $region123: #{residual_attention_block.1} parent=87 // pred_region
          %749 = dma.done [#allocation22], 16
        $region124: #{residual_attention_block.1} parent=87 // pred_fallthru
          _
        // Predicated region
        $region125: #{residual_attention_block.1} parent=87 // pred_check
          %p750 = pneg %p268
        $region126: #{residual_attention_block.1} parent=87 // pred_check_branch
          %752 = sbr.rel (%p750) target = $region128
        $region127: #{residual_attention_block.1} parent=87 // pred_region
          %753 = dma.done [#allocation25], 512
        $region128: #{residual_attention_block.1} parent=87 // pred_fallthru
          _
        // Predicated region
        $region129: #{residual_attention_block.1} parent=87 // pred_check
          %p754 = pneg %p289
        $region130: #{residual_attention_block.1} parent=87 // pred_check_branch
          %756 = sbr.rel (%p754) target = $region132
        $region131: #{residual_attention_block.1} parent=87 // pred_region
          %757 = dma.done [#allocation25], 16
        $region132: #{residual_attention_block.1} parent=87 // pred_fallthru
          _
        // Predicated region
        $region133: #{residual_attention_block.1} parent=87 // pred_check
          %p758 = pneg %p310
        $region134: #{residual_attention_block.1} parent=87 // pred_check_branch
          %760 = sbr.rel (%p758) target = $region136
        $region135: #{residual_attention_block.1} parent=87 // pred_region
          %761 = dma.done [#allocation28], 16
        $region136: #{residual_attention_block.1} parent=87 // pred_fallthru
          _
        // Predicated region
        $region137: #{residual_attention_block.1} parent=87 // pred_check
          %p762 = pneg %p331
        $region138: #{residual_attention_block.1} parent=87 // pred_check_branch
          %764 = sbr.rel (%p762) target = $region140
        $region139: #{residual_attention_block.1} parent=87 // pred_region
          %765 = dma.done [#allocation28], 16
        $region140: #{residual_attention_block.1} parent=87 // pred_fallthru
          _
        %s766 = sand.u32 %s46, 1
        %s767 = scalar_lea.sflag [#allocation31], %s766
        %s768 = sand.u32 %s344, 1
        %s769 = smul.addr %s768, 32
        %s770 = scalar_lea.vmem [#allocation30], %s769
        // Predicated region
        $region141: #{residual_attention_block.1} parent=87 // pred_check
          %p771 = pneg %p357
        $region142: #{residual_attention_block.1} parent=87 // pred_check_branch
          %773 = sbr.rel (%p771) target = $region144
        $region143: #{residual_attention_block.1} parent=87 // pred_region
          %774 = dma.done %s767, 512
        $region144: #{residual_attention_block.1} parent=87 // pred_fallthru
          _
        %s775 = sand.u32 %s46, 1
        %s776 = scalar_lea.sflag [#allocation31], %s775
        %s777 = sand.u32 %s370, 1
        %s778 = scalar_lea.vmem [#allocation32], %s777
        // Predicated region
        $region145: #{residual_attention_block.1} parent=87 // pred_check
          %p779 = pneg %p383
        $region146: #{residual_attention_block.1} parent=87 // pred_check_branch
          %781 = sbr.rel (%p779) target = $region148
        $region147: #{residual_attention_block.1} parent=87 // pred_region
          %782 = dma.done %s776, 16
        $region148: #{residual_attention_block.1} parent=87 // pred_fallthru
          _
        %s783 = sand.u32 %s46, 1
        %s784 = scalar_lea.sflag [#allocation34], %s783
        %s785 = sand.u32 %s396, 1
        %s786 = smul.addr %s785, 64
        %s787 = scalar_lea.vmem [#allocation33], %s786
        // Predicated region
        $region149: #{residual_attention_block.1} parent=87 // pred_check
          %p788 = pneg %p409
        $region150: #{residual_attention_block.1} parent=87 // pred_check_branch
          %790 = sbr.rel (%p788) target = $region152
        $region151: #{residual_attention_block.1} parent=87 // pred_region
          %791 = dma.done %s784, 1024
        $region152: #{residual_attention_block.1} parent=87 // pred_fallthru
          _
        // Predicated region
        $region153: #{residual_attention_block.1} parent=87 // pred_check
          %p792 = pneg %p430
        $region154: #{residual_attention_block.1} parent=87 // pred_check_branch
          %794 = sbr.rel (%p792) target = $region156
        $region155: #{residual_attention_block.1} parent=87 // pred_region
          %795 = dma.done [#allocation34], 16
        $region156: #{residual_attention_block.1} parent=87 // pred_fallthru
          _
        %s796 = sand.u32 %s66, 1
        %s797 = scalar_lea.sflag [#allocation10], %s796
        %s798 = sand.u32 %s66, 1
        %s799 = smul.addr %s798, 8
        %s800 = scalar_lea.vmem [#allocation9], %s799
        %p801 = pneg %p79
        %p802 = pneg %p76
        %p803 = pneg %p100
        %p804 = pneg %p97
        %p805 = pneg %p121
        %p806 = pneg %p118
        %p807 = pneg %p142
        %p808 = pneg %p139
        %p809 = pneg %p163
        %p810 = pneg %p160
        %p811 = pneg %p184
        %p812 = pneg %p181
        %p813 = pneg %p205
        %p814 = pneg %p202
        %p815 = pneg %p226
        %p816 = pneg %p223
        %p817 = pneg %p247
        %p818 = pneg %p244
        %p819 = pneg %p268
        %p820 = pneg %p265
        %p821 = pneg %p289
        %p822 = pneg %p286
        %p823 = pneg %p310
        %p824 = pneg %p307
        %p825 = pneg %p331
        %p826 = pneg %p328
        %s827 = sand.u32 %s46, 1
        %s828 = scalar_lea.sflag [#allocation31], %s827
        %s829 = sand.u32 %s344, 1
        %s830 = smul.addr %s829, 32
        %s831 = scalar_lea.vmem [#allocation30], %s830
        %p832 = pneg %p357
        %p833 = pneg %p354
        %s834 = sand.u32 %s46, 1
        %s835 = scalar_lea.sflag [#allocation31], %s834
        %s836 = sand.u32 %s370, 1
        %s837 = scalar_lea.vmem [#allocation32], %s836
        %p838 = pneg %p383
        %p839 = pneg %p380
        %s840 = sand.u32 %s46, 1
        %s841 = scalar_lea.sflag [#allocation34], %s840
        %s842 = sand.u32 %s396, 1
        %s843 = smul.addr %s842, 64
        %s844 = scalar_lea.vmem [#allocation33], %s843
        %p845 = pneg %p409
        %p846 = pneg %p406
        %p847 = pneg %p430
        %p848 = pneg %p427
        %p849 = pneg %p456
        %p850 = pneg %p453
        %s851 = sand.u32 %s443, 1
        %s852 = scalar_lea.sflag [#allocation11], %s851
        %s853 = sand.u32 %s443, 1
        %s854 = smul.addr %s853, 8
        %s855 = scalar_lea.vmem [#allocation36], %s854
        %s856 = smul.u32 16, %s51
        %p858 = scmp.eq.s32.totalorder %s51, 0
        // Predicated region
        $region157: #{residual_attention_block.1} parent=87 // pred_check
          %p859 = pneg %p858
        $region158: #{residual_attention_block.1} parent=87 // pred_check_branch
          %861 = sbr.rel (%p859) target = $region160
        $region159: #{residual_attention_block.1} parent=87 // pred_region
          %v862 = vld [vmem:[%s713] sm:$0xff]
          %v863 = vld [vmem:[#allocation12] sm:$0x1]
          %v864 = vld [vmem:[#allocation14] sm:$0x1]
          %vm865 = vcmask 523264
          %v866 = vsel %vm865, %v862, 0.0
          %867 = vadd.xlane.f32.xlu0 %v866
          %v868 = vpop.xlane.xlu0 %867
          %v869 = vrcp.pop 64.0
          %v870 = vmul.f32 %v868, %v869
          %v871 = vsub.f32 %v862, %v870
          %v872 = vmul.f32 %v871, %v871
          %v873 = vsel %vm865, %v872, 0.0
          %874 = vadd.xlane.f32.xlu0 %v873
          %v875 = vpop.xlane.xlu0 %874
          %v876 = vmul.f32 %v875, %v869
          %v877 = vadd.f32 %v876, 1e-05
          %v878 = vrsqrt.pop %v877
          %v879 = vmul.f32 %v871, %v878
          %v881 = vlaneseq
          %v882 = vshrl.u32 %v881, 7
          %v883 = vsub.s32 0, %v882
          %v884 = vrot.slane %v863, %v883
          %v886 = vmul.f32 %v879, %v884
          %v888 = vlaneseq
          %v889 = vshrl.u32 %v888, 7
          %v890 = vsub.s32 0, %v889
          %v891 = vrot.slane %v864, %v890
          %v893 = vadd.f32 %v886, %v891
          %v894 = vpack.c.bf16 %v893, %v893
          %v895 = vld [vmem:[#allocation15] sm:$0xf]
          %v896 = vld [vmem:[#allocation15 + $0x4] sm:$0xf]
          %v897 = vld [vmem:[#allocation15 + $0x8] sm:$0xf]
          %v898 = vld [vmem:[#allocation15 + $0xc] sm:$0xf]
          %v899 = vld [vmem:[#allocation15 + $0x10] sm:$0xf]
          %v900 = vld [vmem:[#allocation15 + $0x14] sm:$0xf]
          %v901 = vld [vmem:[#allocation15 + $0x18] sm:$0xf]
          %v902 = vld [vmem:[#allocation15 + $0x1c] sm:$0xf]
          %v903 = vld [vmem:[#allocation20] sm:$0x1]
          %v905 = vlaneseq
          %v906 = vshrl.u32 %v905, 7
          %v907 = vsub.s32 0, %v906
          %v908 = vrot.slane %v903, %v907
          %v918 = vunpack.c.l.b16 %v895
          %v919 = vunpack.c.l.b16 %v896
          %v920 = vunpack.c.l.b16 %v897
          %v921 = vunpack.c.l.b16 %v898
          %v922 = vunpack.c.l.b16 %v899
          %v923 = vunpack.c.l.b16 %v900
          %v924 = vunpack.c.l.b16 %v901
          %v925 = vunpack.c.l.b16 %v902
          %v926 = vpack.c.b16 %v919, %v918
          %v927 = vpack.c.b16 %v921, %v920
          %v928 = vpack.c.b16 %v923, %v922
          %v929 = vpack.c.b16 %v925, %v924
          %v935 = vsel %vm865, %v894, 0
          %937 = vmatprep.subr.bf16.mxu0 0
          %938 = vmatpush1.bf16.msra.mxu0 %v926
          %939 = vmatprep.subr.bf16.mxu0 0
          %940 = vmatpush1.bf16.msra.mxu0 %v927
          %941 = vmatprep.subr.bf16.mxu0 0
          %942 = vmatpush1.bf16.msra.mxu0 %v928
          %943 = vmatprep.subr.bf16.mxu0 0
          %944 = vmatpush1.bf16.msra.mxu0 %v929
          %945 = vmatprep.subr.bf16.mxu0 0
          %946 = vmatpush1.bf16.msra.mxu0 0
          %947 = vmatprep.subr.bf16.mxu0 0
          %948 = vmatpush1.bf16.msra.mxu0 0
          %949 = vmatprep.subr.bf16.mxu0 0
          %950 = vmatpush1.bf16.msra.mxu0 0
          %951 = vmatprep.subr.bf16.mxu0 0
          %952 = vmatpush1.bf16.msra.mxu0 0
          %953 = vmatprep.subr.bf16.mxu0 0
          %954 = vmatpush1.bf16.msra.mxu0 0
          %955 = vmatprep.subr.bf16.mxu0 0
          %956 = vmatpush1.bf16.msra.mxu0 0
          %957 = vmatprep.subr.bf16.mxu0 0
          %958 = vmatpush1.bf16.msra.mxu0 0
          %959 = vmatprep.subr.bf16.mxu0 0
          %960 = vmatpush1.bf16.msra.mxu0 0
          %961 = vmatprep.subr.bf16.mxu0 0
          %962 = vmatpush1.bf16.msra.mxu0 0
          %963 = vmatprep.subr.bf16.mxu0 0
          %964 = vmatpush1.bf16.msra.mxu0 0
          %965 = vmatprep.subr.bf16.mxu0 0
          %966 = vmatpush1.bf16.msra.mxu0 0
          %967 = vmatprep.subr.bf16.mxu0 0
          %968 = vmatpush1.bf16.msra.mxu0 0
          %969 = vmatprep.mubr.bf16.mxu0 0
          %970 = vmatmul.mubr.bf16.gmra.mrb[0].mxu0 %v935
          %v971 = vpop.f32.mrb[0].mxu0
          %v972 = vadd.f32 %v908, %v971
          %v973 = vpop.f32.mrb[0].mxu0
          %v974 = vpop.f32.mrb[0].mxu0
          %v975 = vpop.f32.mrb[0].mxu0
          %976 = vdwg.mxu0
          %977 = vst.msk [vmem:[#allocation2] sm:$0xff] %vm865, %v972
          %v978 = vld [vmem:[#allocation17] sm:$0xf]
          %v979 = vld [vmem:[#allocation17 + $0x4] sm:$0xf]
          %v980 = vld [vmem:[#allocation17 + $0x8] sm:$0xf]
          %v981 = vld [vmem:[#allocation17 + $0xc] sm:$0xf]
          %v982 = vld [vmem:[#allocation17 + $0x10] sm:$0xf]
          %v983 = vld [vmem:[#allocation17 + $0x14] sm:$0xf]
          %v984 = vld [vmem:[#allocation17 + $0x18] sm:$0xf]
          %v985 = vld [vmem:[#allocation17 + $0x1c] sm:$0xf]
          %v986 = vld [vmem:[#allocation21] sm:$0x1]
          %v988 = vlaneseq
          %v989 = vshrl.u32 %v988, 7
          %v990 = vsub.s32 0, %v989
          %v991 = vrot.slane %v986, %v990
          %v1001 = vunpack.c.l.b16 %v978
          %v1002 = vunpack.c.l.b16 %v979
          %v1003 = vunpack.c.l.b16 %v980
          %v1004 = vunpack.c.l.b16 %v981
          %v1005 = vunpack.c.l.b16 %v982
          %v1006 = vunpack.c.l.b16 %v983
          %v1007 = vunpack.c.l.b16 %v984
          %v1008 = vunpack.c.l.b16 %v985
          %v1009 = vpack.c.b16 %v1002, %v1001
          %v1010 = vpack.c.b16 %v1004, %v1003
          %v1011 = vpack.c.b16 %v1006, %v1005
          %v1012 = vpack.c.b16 %v1008, %v1007
          %1017 = vmatprep.subr.bf16.mxu0 0
          %1018 = vmatpush1.bf16.msra.mxu0 %v1009
          %1019 = vmatprep.subr.bf16.mxu0 0
          %1020 = vmatpush1.bf16.msra.mxu0 %v1010
          %1021 = vmatprep.subr.bf16.mxu0 0
          %1022 = vmatpush1.bf16.msra.mxu0 %v1011
          %1023 = vmatprep.subr.bf16.mxu0 0
          %1024 = vmatpush1.bf16.msra.mxu0 %v1012
          %1025 = vmatprep.subr.bf16.mxu0 0
          %1026 = vmatpush1.bf16.msra.mxu0 0
          %1027 = vmatprep.subr.bf16.mxu0 0
          %1028 = vmatpush1.bf16.msra.mxu0 0
          %1029 = vmatprep.subr.bf16.mxu0 0
          %1030 = vmatpush1.bf16.msra.mxu0 0
          %1031 = vmatprep.subr.bf16.mxu0 0
          %1032 = vmatpush1.bf16.msra.mxu0 0
          %1033 = vmatprep.subr.bf16.mxu0 0
          %1034 = vmatpush1.bf16.msra.mxu0 0
          %1035 = vmatprep.subr.bf16.mxu0 0
          %1036 = vmatpush1.bf16.msra.mxu0 0
          %1037 = vmatprep.subr.bf16.mxu0 0
          %1038 = vmatpush1.bf16.msra.mxu0 0
          %1039 = vmatprep.subr.bf16.mxu0 0
          %1040 = vmatpush1.bf16.msra.mxu0 0
          %1041 = vmatprep.subr.bf16.mxu0 0
          %1042 = vmatpush1.bf16.msra.mxu0 0
          %1043 = vmatprep.subr.bf16.mxu0 0
          %1044 = vmatpush1.bf16.msra.mxu0 0
          %1045 = vmatprep.subr.bf16.mxu0 0
          %1046 = vmatpush1.bf16.msra.mxu0 0
          %1047 = vmatprep.subr.bf16.mxu0 0
          %1048 = vmatpush1.bf16.msra.mxu0 0
          %1049 = vmatprep.mubr.bf16.mxu0 0
          %1050 = vmatmul.mubr.bf16.gmra.mrb[0].mxu0 %v935
          %v1051 = vpop.f32.mrb[0].mxu0
          %v1052 = vadd.f32 %v991, %v1051
          %v1053 = vpop.f32.mrb[0].mxu0
          %v1054 = vpop.f32.mrb[0].mxu0
          %v1055 = vpop.f32.mrb[0].mxu0
          %1056 = vdwg.mxu0
          %1057 = vst.msk [vmem:[#allocation3] sm:$0xff] %vm865, %v1052
          %v1058 = vld [vmem:[#allocation18] sm:$0xf]
          %v1059 = vld [vmem:[#allocation18 + $0x4] sm:$0xf]
          %v1060 = vld [vmem:[#allocation18 + $0x8] sm:$0xf]
          %v1061 = vld [vmem:[#allocation18 + $0xc] sm:$0xf]
          %v1062 = vld [vmem:[#allocation18 + $0x10] sm:$0xf]
          %v1063 = vld [vmem:[#allocation18 + $0x14] sm:$0xf]
          %v1064 = vld [vmem:[#allocation18 + $0x18] sm:$0xf]
          %v1065 = vld [vmem:[#allocation18 + $0x1c] sm:$0xf]
          %v1066 = vld [vmem:[#allocation23] sm:$0x1]
          %v1068 = vlaneseq
          %v1069 = vshrl.u32 %v1068, 7
          %v1070 = vsub.s32 0, %v1069
          %v1071 = vrot.slane %v1066, %v1070
          %v1081 = vunpack.c.l.b16 %v1058
          %v1082 = vunpack.c.l.b16 %v1059
          %v1083 = vunpack.c.l.b16 %v1060
          %v1084 = vunpack.c.l.b16 %v1061
          %v1085 = vunpack.c.l.b16 %v1062
          %v1086 = vunpack.c.l.b16 %v1063
          %v1087 = vunpack.c.l.b16 %v1064
          %v1088 = vunpack.c.l.b16 %v1065
          %v1089 = vpack.c.b16 %v1082, %v1081
          %v1090 = vpack.c.b16 %v1084, %v1083
          %v1091 = vpack.c.b16 %v1086, %v1085
          %v1092 = vpack.c.b16 %v1088, %v1087
          %1097 = vmatprep.subr.bf16.mxu0 0
          %1098 = vmatpush1.bf16.msra.mxu0 %v1089
          %1099 = vmatprep.subr.bf16.mxu0 0
          %1100 = vmatpush1.bf16.msra.mxu0 %v1090
          %1101 = vmatprep.subr.bf16.mxu0 0
          %1102 = vmatpush1.bf16.msra.mxu0 %v1091
          %1103 = vmatprep.subr.bf16.mxu0 0
          %1104 = vmatpush1.bf16.msra.mxu0 %v1092
          %1105 = vmatprep.subr.bf16.mxu0 0
          %1106 = vmatpush1.bf16.msra.mxu0 0
          %1107 = vmatprep.subr.bf16.mxu0 0
          %1108 = vmatpush1.bf16.msra.mxu0 0
          %1109 = vmatprep.subr.bf16.mxu0 0
          %1110 = vmatpush1.bf16.msra.mxu0 0
          %1111 = vmatprep.subr.bf16.mxu0 0
          %1112 = vmatpush1.bf16.msra.mxu0 0
          %1113 = vmatprep.subr.bf16.mxu0 0
          %1114 = vmatpush1.bf16.msra.mxu0 0
          %1115 = vmatprep.subr.bf16.mxu0 0
          %1116 = vmatpush1.bf16.msra.mxu0 0
          %1117 = vmatprep.subr.bf16.mxu0 0
          %1118 = vmatpush1.bf16.msra.mxu0 0
          %1119 = vmatprep.subr.bf16.mxu0 0
          %1120 = vmatpush1.bf16.msra.mxu0 0
          %1121 = vmatprep.subr.bf16.mxu0 0
          %1122 = vmatpush1.bf16.msra.mxu0 0
          %1123 = vmatprep.subr.bf16.mxu0 0
          %1124 = vmatpush1.bf16.msra.mxu0 0
          %1125 = vmatprep.subr.bf16.mxu0 0
          %1126 = vmatpush1.bf16.msra.mxu0 0
          %1127 = vmatprep.subr.bf16.mxu0 0
          %1128 = vmatpush1.bf16.msra.mxu0 0
          %1129 = vmatprep.mubr.bf16.mxu0 0
          %1130 = vmatmul.mubr.bf16.gmra.mrb[0].mxu0 %v935
          %v1131 = vpop.f32.mrb[0].mxu0
          %v1132 = vadd.f32 %v1071, %v1131
          %v1133 = vpop.f32.mrb[0].mxu0
          %v1134 = vpop.f32.mrb[0].mxu0
          %v1135 = vpop.f32.mrb[0].mxu0
          %1136 = vdwg.mxu0
          %1137 = vst.msk [vmem:[#allocation4] sm:$0xff] %vm865, %v1132
          %v1138 = vld [vmem:[#allocation2] sm:$0xff]
          %v1139 = vpack.c.bf16 %v1138, %v1138
          %v1140 = vld [vmem:[#allocation3] sm:$0xff]
          %v1141 = vpack.c.bf16 %v1140, %v1140
          %v1142 = vld [vmem:[#allocation4] sm:$0xff]
          %v1143 = vpack.c.bf16 %v1142, %v1142
          %vm1144 = vcmask 130048
          %v1146 = vsel %vm1144, %v1139, 0
          %v1149 = vsel %vm1144, %v1141, 0
          %1151 = vmatprep.subr.bf16.mxu0 0
          %1152 = vmatpush1.bf16.xpose.msra.mxu0 %v1149
          %1153 = vmatprep.subr.bf16.mxu0 0
          %1154 = vmatpush1.bf16.xpose.msra.mxu0 0
          %1155 = vmatprep.subr.bf16.mxu0 0
          %1156 = vmatpush1.bf16.xpose.msra.mxu0 0
          %1157 = vmatprep.subr.bf16.mxu0 0
          %1158 = vmatpush1.bf16.xpose.msra.mxu0 0
          %1159 = vmatprep.subr.bf16.mxu0 0
          %1160 = vmatpush1.bf16.xpose.msra.mxu0 0
          %1161 = vmatprep.subr.bf16.mxu0 0
          %1162 = vmatpush1.bf16.xpose.msra.mxu0 0
          %1163 = vmatprep.subr.bf16.mxu0 0
          %1164 = vmatpush1.bf16.xpose.msra.mxu0 0
          %1165 = vmatprep.subr.bf16.mxu0 0
          %1166 = vmatpush1.bf16.xpose.msra.mxu0 0
          %1167 = vmatprep.subr.bf16.mxu0 0
          %1168 = vmatpush1.bf16.xpose.msra.mxu0 0
          %1169 = vmatprep.subr.bf16.mxu0 0
          %1170 = vmatpush1.bf16.xpose.msra.mxu0 0
          %1171 = vmatprep.subr.bf16.mxu0 0
          %1172 = vmatpush1.bf16.xpose.msra.mxu0 0
          %1173 = vmatprep.subr.bf16.mxu0 0
          %1174 = vmatpush1.bf16.xpose.msra.mxu0 0
          %1175 = vmatprep.subr.bf16.mxu0 0
          %1176 = vmatpush1.bf16.xpose.msra.mxu0 0
          %1177 = vmatprep.subr.bf16.mxu0 0
          %1178 = vmatpush1.bf16.xpose.msra.mxu0 0
          %1179 = vmatprep.subr.bf16.mxu0 0
          %1180 = vmatpush1.bf16.xpose.msra.mxu0 0
          %1181 = vmatprep.subr.bf16.mxu0 0
          %1182 = vmatpush1.bf16.xpose.msra.mxu0 0
          %1183 = vmatprep.mubr.bf16.mxu0 0
          %1184 = vmatmul.mubr.bf16.gmra.mrb[0].mxu0 %v1146
          %v1185 = vpop.f32.mrb[0].mxu0
          %v1186 = vadd.f32 0.0, %v1185
          %v1187 = vpop.f32.mrb[0].mxu0
          %v1188 = vpop.f32.mrb[0].mxu0
          %v1189 = vpop.f32.mrb[0].mxu0
          %1190 = vdwg.mxu0
          %vm1191 = vcmask 64512
          %v1192 = vsel %vm1191, %v1186, -inf
          %1193 = vmax.xlane.f32.xlu0 %v1192
          %v1194 = vpop.xlane.xlu0 %1193
          %v1195 = vsub.f32 %v1186, %v1194
          %v1196 = vmul.f32 %v1195, 1.442695
          %v1197 = vpow.pop %v1196
          %v1198 = vsel %vm1191, %v1197, 0.0
          %1199 = vadd.xlane.f32.xlu0 %v1198
          %v1200 = vpop.xlane.xlu0 %1199
          %v1201 = vrcp.pop %v1200
          %v1202 = vmul.f32 %v1197, %v1201
          %v1203 = vpack.c.bf16 %v1202, %v1202
          %v1205 = vsel %vm1191, %v1203, 0
          %vm1207 = vcmask 1043456
          %v1209 = vsel %vm1207, %v1143, 0
          %1211 = vmatprep.subr.bf16.mxu0 0
          %1212 = vmatpush1.bf16.msra.mxu0 %v1209
          %1213 = vmatprep.subr.bf16.mxu0 0
          %1214 = vmatpush1.bf16.msra.mxu0 0
          %1215 = vmatprep.subr.bf16.mxu0 0
          %1216 = vmatpush1.bf16.msra.mxu0 0
          %1217 = vmatprep.subr.bf16.mxu0 0
          %1218 = vmatpush1.bf16.msra.mxu0 0
          %1219 = vmatprep.subr.bf16.mxu0 0
          %1220 = vmatpush1.bf16.msra.mxu0 0
          %1221 = vmatprep.subr.bf16.mxu0 0
          %1222 = vmatpush1.bf16.msra.mxu0 0
          %1223 = vmatprep.subr.bf16.mxu0 0
          %1224 = vmatpush1.bf16.msra.mxu0 0
          %1225 = vmatprep.subr.bf16.mxu0 0
          %1226 = vmatpush1.bf16.msra.mxu0 0
          %1227 = vmatprep.subr.bf16.mxu0 0
          %1228 = vmatpush1.bf16.msra.mxu0 0
          %1229 = vmatprep.subr.bf16.mxu0 0
          %1230 = vmatpush1.bf16.msra.mxu0 0
          %1231 = vmatprep.subr.bf16.mxu0 0
          %1232 = vmatpush1.bf16.msra.mxu0 0
          %1233 = vmatprep.subr.bf16.mxu0 0
          %1234 = vmatpush1.bf16.msra.mxu0 0
          %1235 = vmatprep.subr.bf16.mxu0 0
          %1236 = vmatpush1.bf16.msra.mxu0 0
          %1237 = vmatprep.subr.bf16.mxu0 0
          %1238 = vmatpush1.bf16.msra.mxu0 0
          %1239 = vmatprep.subr.bf16.mxu0 0
          %1240 = vmatpush1.bf16.msra.mxu0 0
          %1241 = vmatprep.subr.bf16.mxu0 0
          %1242 = vmatpush1.bf16.msra.mxu0 0
          %1243 = vmatprep.mubr.bf16.mxu0 0
          %1244 = vmatmul.mubr.bf16.gmra.mrb[0].mxu0 %v1205
          %v1245 = vpop.f32.mrb[0].mxu0
          %v1246 = vadd.f32 0.0, %v1245
          %v1247 = vpop.f32.mrb[0].mxu0
          %v1248 = vpop.f32.mrb[0].mxu0
          %v1249 = vpop.f32.mrb[0].mxu0
          %1250 = vdwg.mxu0
          %1251 = vst.msk [vmem:[#allocation5] sm:$0xff] %vm1144, %v1246
          %v1252 = vld [vmem:[#allocation2] sm:$0xff]
          %v1253 = vpack.c.bf16 %v1252, %v1252
          %v1254 = vld [vmem:[#allocation3] sm:$0xff]
          %v1255 = vpack.c.bf16 %v1254, %v1254
          %v1256 = vld [vmem:[#allocation4] sm:$0xff]
          %v1257 = vpack.c.bf16 %v1256, %v1256
          %1259 = vrot.lane.b32.xlu0 %v1253, 112
          %v1260 = vpop.permute.xlu0 %1259
          %1262 = vrot.lane.b32.xlu0 %v1255, 112
          %v1263 = vpop.permute.xlu0 %1262
          %v1265 = vsel %vm1144, %v1260, 0
          %v1268 = vsel %vm1144, %v1263, 0
          %1270 = vmatprep.subr.bf16.mxu0 0
          %1271 = vmatpush1.bf16.xpose.msra.mxu0 %v1268
          %1272 = vmatprep.subr.bf16.mxu0 0
          %1273 = vmatpush1.bf16.xpose.msra.mxu0 0
          %1274 = vmatprep.subr.bf16.mxu0 0
          %1275 = vmatpush1.bf16.xpose.msra.mxu0 0
          %1276 = vmatprep.subr.bf16.mxu0 0
          %1277 = vmatpush1.bf16.xpose.msra.mxu0 0
          %1278 = vmatprep.subr.bf16.mxu0 0
          %1279 = vmatpush1.bf16.xpose.msra.mxu0 0
          %1280 = vmatprep.subr.bf16.mxu0 0
          %1281 = vmatpush1.bf16.xpose.msra.mxu0 0
          %1282 = vmatprep.subr.bf16.mxu0 0
          %1283 = vmatpush1.bf16.xpose.msra.mxu0 0
          %1284 = vmatprep.subr.bf16.mxu0 0
          %1285 = vmatpush1.bf16.xpose.msra.mxu0 0
          %1286 = vmatprep.subr.bf16.mxu0 0
          %1287 = vmatpush1.bf16.xpose.msra.mxu0 0
          %1288 = vmatprep.subr.bf16.mxu0 0
          %1289 = vmatpush1.bf16.xpose.msra.mxu0 0
          %1290 = vmatprep.subr.bf16.mxu0 0
          %1291 = vmatpush1.bf16.xpose.msra.mxu0 0
          %1292 = vmatprep.subr.bf16.mxu0 0
          %1293 = vmatpush1.bf16.xpose.msra.mxu0 0
          %1294 = vmatprep.subr.bf16.mxu0 0
          %1295 = vmatpush1.bf16.xpose.msra.mxu0 0
          %1296 = vmatprep.subr.bf16.mxu0 0
          %1297 = vmatpush1.bf16.xpose.msra.mxu0 0
          %1298 = vmatprep.subr.bf16.mxu0 0
          %1299 = vmatpush1.bf16.xpose.msra.mxu0 0
          %1300 = vmatprep.subr.bf16.mxu0 0
          %1301 = vmatpush1.bf16.xpose.msra.mxu0 0
          %1302 = vmatprep.mubr.bf16.mxu0 0
          %1303 = vmatmul.mubr.bf16.gmra.mrb[0].mxu0 %v1265
          %v1304 = vpop.f32.mrb[0].mxu0
          %v1305 = vadd.f32 0.0, %v1304
          %v1306 = vpop.f32.mrb[0].mxu0
          %v1307 = vpop.f32.mrb[0].mxu0
          %v1308 = vpop.f32.mrb[0].mxu0
          %1309 = vdwg.mxu0
          %v1310 = vsel %vm1191, %v1305, -inf
          %1311 = vmax.xlane.f32.xlu0 %v1310
          %v1312 = vpop.xlane.xlu0 %1311
          %v1313 = vsub.f32 %v1305, %v1312
          %v1314 = vmul.f32 %v1313, 1.442695
          %v1315 = vpow.pop %v1314
          %v1316 = vsel %vm1191, %v1315, 0.0
          %1317 = vadd.xlane.f32.xlu0 %v1316
          %v1318 = vpop.xlane.xlu0 %1317
          %v1319 = vrcp.pop %v1318
          %v1320 = vmul.f32 %v1315, %v1319
          %v1321 = vpack.c.bf16 %v1320, %v1320
          %1323 = vrot.lane.b32.xlu0 %v1257, 112
          %v1324 = vpop.permute.xlu0 %1323
          %v1326 = vsel %vm1191, %v1321, 0
          %v1329 = vsel %vm1207, %v1324, 0
          %1331 = vmatprep.subr.bf16.mxu0 0
          %1332 = vmatpush1.bf16.msra.mxu0 %v1329
          %1333 = vmatprep.subr.bf16.mxu0 0
          %1334 = vmatpush1.bf16.msra.mxu0 0
          %1335 = vmatprep.subr.bf16.mxu0 0
          %1336 = vmatpush1.bf16.msra.mxu0 0
          %1337 = vmatprep.subr.bf16.mxu0 0
          %1338 = vmatpush1.bf16.msra.mxu0 0
          %1339 = vmatprep.subr.bf16.mxu0 0
          %1340 = vmatpush1.bf16.msra.mxu0 0
          %1341 = vmatprep.subr.bf16.mxu0 0
          %1342 = vmatpush1.bf16.msra.mxu0 0
          %1343 = vmatprep.subr.bf16.mxu0 0
          %1344 = vmatpush1.bf16.msra.mxu0 0
          %1345 = vmatprep.subr.bf16.mxu0 0
          %1346 = vmatpush1.bf16.msra.mxu0 0
          %1347 = vmatprep.subr.bf16.mxu0 0
          %1348 = vmatpush1.bf16.msra.mxu0 0
          %1349 = vmatprep.subr.bf16.mxu0 0
          %1350 = vmatpush1.bf16.msra.mxu0 0
          %1351 = vmatprep.subr.bf16.mxu0 0
          %1352 = vmatpush1.bf16.msra.mxu0 0
          %1353 = vmatprep.subr.bf16.mxu0 0
          %1354 = vmatpush1.bf16.msra.mxu0 0
          %1355 = vmatprep.subr.bf16.mxu0 0
          %1356 = vmatpush1.bf16.msra.mxu0 0
          %1357 = vmatprep.subr.bf16.mxu0 0
          %1358 = vmatpush1.bf16.msra.mxu0 0
          %1359 = vmatprep.subr.bf16.mxu0 0
          %1360 = vmatpush1.bf16.msra.mxu0 0
          %1361 = vmatprep.subr.bf16.mxu0 0
          %1362 = vmatpush1.bf16.msra.mxu0 0
          %1363 = vmatprep.mubr.bf16.mxu0 0
          %1364 = vmatmul.mubr.bf16.gmra.mrb[0].mxu0 %v1326
          %v1365 = vpop.f32.mrb[0].mxu0
          %v1366 = vadd.f32 0.0, %v1365
          %v1367 = vpop.f32.mrb[0].mxu0
          %v1368 = vpop.f32.mrb[0].mxu0
          %v1369 = vpop.f32.mrb[0].mxu0
          %1370 = vdwg.mxu0
          %1372 = vrot.lane.b32.xlu0 %v1366, 16
          %v1373 = vpop.permute.xlu0 %1372
          %vm1375 = vcmask 261248
          %1376 = vst.msk [vmem:[#allocation5] sm:$0xff] %vm1375, %v1373
          %v1377 = vld [vmem:[#allocation2] sm:$0xff]
          %v1378 = vpack.c.bf16 %v1377, %v1377
          %v1379 = vld [vmem:[#allocation3] sm:$0xff]
          %v1380 = vpack.c.bf16 %v1379, %v1379
          %v1381 = vld [vmem:[#allocation4] sm:$0xff]
          %v1382 = vpack.c.bf16 %v1381, %v1381
          %1384 = vrot.lane.b32.xlu0 %v1378, 96
          %v1385 = vpop.permute.xlu0 %1384
          %1387 = vrot.lane.b32.xlu0 %v1380, 96
          %v1388 = vpop.permute.xlu0 %1387
          %v1390 = vsel %vm1144, %v1385, 0
          %v1393 = vsel %vm1144, %v1388, 0
          %1395 = vmatprep.subr.bf16.mxu0 0
          %1396 = vmatpush1.bf16.xpose.msra.mxu0 %v1393
          %1397 = vmatprep.subr.bf16.mxu0 0
          %1398 = vmatpush1.bf16.xpose.msra.mxu0 0
          %1399 = vmatprep.subr.bf16.mxu0 0
          %1400 = vmatpush1.bf16.xpose.msra.mxu0 0
          %1401 = vmatprep.subr.bf16.mxu0 0
          %1402 = vmatpush1.bf16.xpose.msra.mxu0 0
          %1403 = vmatprep.subr.bf16.mxu0 0
          %1404 = vmatpush1.bf16.xpose.msra.mxu0 0
          %1405 = vmatprep.subr.bf16.mxu0 0
          %1406 = vmatpush1.bf16.xpose.msra.mxu0 0
          %1407 = vmatprep.subr.bf16.mxu0 0
          %1408 = vmatpush1.bf16.xpose.msra.mxu0 0
          %1409 = vmatprep.subr.bf16.mxu0 0
          %1410 = vmatpush1.bf16.xpose.msra.mxu0 0
          %1411 = vmatprep.subr.bf16.mxu0 0
          %1412 = vmatpush1.bf16.xpose.msra.mxu0 0
          %1413 = vmatprep.subr.bf16.mxu0 0
          %1414 = vmatpush1.bf16.xpose.msra.mxu0 0
          %1415 = vmatprep.subr.bf16.mxu0 0
          %1416 = vmatpush1.bf16.xpose.msra.mxu0 0
          %1417 = vmatprep.subr.bf16.mxu0 0
          %1418 = vmatpush1.bf16.xpose.msra.mxu0 0
          %1419 = vmatprep.subr.bf16.mxu0 0
          %1420 = vmatpush1.bf16.xpose.msra.mxu0 0
          %1421 = vmatprep.subr.bf16.mxu0 0
          %1422 = vmatpush1.bf16.xpose.msra.mxu0 0
          %1423 = vmatprep.subr.bf16.mxu0 0
          %1424 = vmatpush1.bf16.xpose.msra.mxu0 0
          %1425 = vmatprep.subr.bf16.mxu0 0
          %1426 = vmatpush1.bf16.xpose.msra.mxu0 0
          %1427 = vmatprep.mubr.bf16.mxu0 0
          %1428 = vmatmul.mubr.bf16.gmra.mrb[0].mxu0 %v1390
          %v1429 = vpop.f32.mrb[0].mxu0
          %v1430 = vadd.f32 0.0, %v1429
          %v1431 = vpop.f32.mrb[0].mxu0
          %v1432 = vpop.f32.mrb[0].mxu0
          %v1433 = vpop.f32.mrb[0].mxu0
          %1434 = vdwg.mxu0
          %v1435 = vsel %vm1191, %v1430, -inf
          %1436 = vmax.xlane.f32.xlu0 %v1435
          %v1437 = vpop.xlane.xlu0 %1436
          %v1438 = vsub.f32 %v1430, %v1437
          %v1439 = vmul.f32 %v1438, 1.442695
          %v1440 = vpow.pop %v1439
          %v1441 = vsel %vm1191, %v1440, 0.0
          %1442 = vadd.xlane.f32.xlu0 %v1441
          %v1443 = vpop.xlane.xlu0 %1442
          %v1444 = vrcp.pop %v1443
          %v1445 = vmul.f32 %v1440, %v1444
          %v1446 = vpack.c.bf16 %v1445, %v1445
          %1448 = vrot.lane.b32.xlu0 %v1382, 96
          %v1449 = vpop.permute.xlu0 %1448
          %v1451 = vsel %vm1191, %v1446, 0
          %v1454 = vsel %vm1207, %v1449, 0
          %1456 = vmatprep.subr.bf16.mxu0 0
          %1457 = vmatpush1.bf16.msra.mxu0 %v1454
          %1458 = vmatprep.subr.bf16.mxu0 0
          %1459 = vmatpush1.bf16.msra.mxu0 0
          %1460 = vmatprep.subr.bf16.mxu0 0
          %1461 = vmatpush1.bf16.msra.mxu0 0
          %1462 = vmatprep.subr.bf16.mxu0 0
          %1463 = vmatpush1.bf16.msra.mxu0 0
          %1464 = vmatprep.subr.bf16.mxu0 0
          %1465 = vmatpush1.bf16.msra.mxu0 0
          %1466 = vmatprep.subr.bf16.mxu0 0
          %1467 = vmatpush1.bf16.msra.mxu0 0
          %1468 = vmatprep.subr.bf16.mxu0 0
          %1469 = vmatpush1.bf16.msra.mxu0 0
          %1470 = vmatprep.subr.bf16.mxu0 0
          %1471 = vmatpush1.bf16.msra.mxu0 0
          %1472 = vmatprep.subr.bf16.mxu0 0
          %1473 = vmatpush1.bf16.msra.mxu0 0
          %1474 = vmatprep.subr.bf16.mxu0 0
          %1475 = vmatpush1.bf16.msra.mxu0 0
          %1476 = vmatprep.subr.bf16.mxu0 0
          %1477 = vmatpush1.bf16.msra.mxu0 0
          %1478 = vmatprep.subr.bf16.mxu0 0
          %1479 = vmatpush1.bf16.msra.mxu0 0
          %1480 = vmatprep.subr.bf16.mxu0 0
          %1481 = vmatpush1.bf16.msra.mxu0 0
          %1482 = vmatprep.subr.bf16.mxu0 0
          %1483 = vmatpush1.bf16.msra.mxu0 0
          %1484 = vmatprep.subr.bf16.mxu0 0
          %1485 = vmatpush1.bf16.msra.mxu0 0
          %1486 = vmatprep.subr.bf16.mxu0 0
          %1487 = vmatpush1.bf16.msra.mxu0 0
          %1488 = vmatprep.mubr.bf16.mxu0 0
          %1489 = vmatmul.mubr.bf16.gmra.mrb[0].mxu0 %v1451
          %v1490 = vpop.f32.mrb[0].mxu0
          %v1491 = vadd.f32 0.0, %v1490
          %v1492 = vpop.f32.mrb[0].mxu0
          %v1493 = vpop.f32.mrb[0].mxu0
          %v1494 = vpop.f32.mrb[0].mxu0
          %1495 = vdwg.mxu0
          %1497 = vrot.lane.b32.xlu0 %v1491, 32
          %v1498 = vpop.permute.xlu0 %1497
          %vm1500 = vcmask 392448
          %1501 = vst.msk [vmem:[#allocation5] sm:$0xff] %vm1500, %v1498
          %v1502 = vld [vmem:[#allocation2] sm:$0xff]
          %v1503 = vpack.c.bf16 %v1502, %v1502
          %v1504 = vld [vmem:[#allocation3] sm:$0xff]
          %v1505 = vpack.c.bf16 %v1504, %v1504
          %v1506 = vld [vmem:[#allocation4] sm:$0xff]
          %v1507 = vpack.c.bf16 %v1506, %v1506
          %1509 = vrot.lane.b32.xlu0 %v1503, 80
          %v1510 = vpop.permute.xlu0 %1509
          %1512 = vrot.lane.b32.xlu0 %v1505, 80
          %v1513 = vpop.permute.xlu0 %1512
          %v1515 = vsel %vm1144, %v1510, 0
          %v1518 = vsel %vm1144, %v1513, 0
          %1520 = vmatprep.subr.bf16.mxu0 0
          %1521 = vmatpush1.bf16.xpose.msra.mxu0 %v1518
          %1522 = vmatprep.subr.bf16.mxu0 0
          %1523 = vmatpush1.bf16.xpose.msra.mxu0 0
          %1524 = vmatprep.subr.bf16.mxu0 0
          %1525 = vmatpush1.bf16.xpose.msra.mxu0 0
          %1526 = vmatprep.subr.bf16.mxu0 0
          %1527 = vmatpush1.bf16.xpose.msra.mxu0 0
          %1528 = vmatprep.subr.bf16.mxu0 0
          %1529 = vmatpush1.bf16.xpose.msra.mxu0 0
          %1530 = vmatprep.subr.bf16.mxu0 0
          %1531 = vmatpush1.bf16.xpose.msra.mxu0 0
          %1532 = vmatprep.subr.bf16.mxu0 0
          %1533 = vmatpush1.bf16.xpose.msra.mxu0 0
          %1534 = vmatprep.subr.bf16.mxu0 0
          %1535 = vmatpush1.bf16.xpose.msra.mxu0 0
          %1536 = vmatprep.subr.bf16.mxu0 0
          %1537 = vmatpush1.bf16.xpose.msra.mxu0 0
          %1538 = vmatprep.subr.bf16.mxu0 0
          %1539 = vmatpush1.bf16.xpose.msra.mxu0 0
          %1540 = vmatprep.subr.bf16.mxu0 0
          %1541 = vmatpush1.bf16.xpose.msra.mxu0 0
          %1542 = vmatprep.subr.bf16.mxu0 0
          %1543 = vmatpush1.bf16.xpose.msra.mxu0 0
          %1544 = vmatprep.subr.bf16.mxu0 0
          %1545 = vmatpush1.bf16.xpose.msra.mxu0 0
          %1546 = vmatprep.subr.bf16.mxu0 0
          %1547 = vmatpush1.bf16.xpose.msra.mxu0 0
          %1548 = vmatprep.subr.bf16.mxu0 0
          %1549 = vmatpush1.bf16.xpose.msra.mxu0 0
          %1550 = vmatprep.subr.bf16.mxu0 0
          %1551 = vmatpush1.bf16.xpose.msra.mxu0 0
          %1552 = vmatprep.mubr.bf16.mxu0 0
          %1553 = vmatmul.mubr.bf16.gmra.mrb[0].mxu0 %v1515
          %v1554 = vpop.f32.mrb[0].mxu0
          %v1555 = vadd.f32 0.0, %v1554
          %v1556 = vpop.f32.mrb[0].mxu0
          %v1557 = vpop.f32.mrb[0].mxu0
          %v1558 = vpop.f32.mrb[0].mxu0
          %1559 = vdwg.mxu0
          %v1560 = vsel %vm1191, %v1555, -inf
          %1561 = vmax.xlane.f32.xlu0 %v1560
          %v1562 = vpop.xlane.xlu0 %1561
          %v1563 = vsub.f32 %v1555, %v1562
          %v1564 = vmul.f32 %v1563, 1.442695
          %v1565 = vpow.pop %v1564
          %v1566 = vsel %vm1191, %v1565, 0.0
          %1567 = vadd.xlane.f32.xlu0 %v1566
          %v1568 = vpop.xlane.xlu0 %1567
          %v1569 = vrcp.pop %v1568
          %v1570 = vmul.f32 %v1565, %v1569
          %v1571 = vpack.c.bf16 %v1570, %v1570
          %1573 = vrot.lane.b32.xlu0 %v1507, 80
          %v1574 = vpop.permute.xlu0 %1573
          %v1576 = vsel %vm1191, %v1571, 0
          %v1579 = vsel %vm1207, %v1574, 0
          %1581 = vmatprep.subr.bf16.mxu0 0
          %1582 = vmatpush1.bf16.msra.mxu0 %v1579
          %1583 = vmatprep.subr.bf16.mxu0 0
          %1584 = vmatpush1.bf16.msra.mxu0 0
          %1585 = vmatprep.subr.bf16.mxu0 0
          %1586 = vmatpush1.bf16.msra.mxu0 0
          %1587 = vmatprep.subr.bf16.mxu0 0
          %1588 = vmatpush1.bf16.msra.mxu0 0
          %1589 = vmatprep.subr.bf16.mxu0 0
          %1590 = vmatpush1.bf16.msra.mxu0 0
          %1591 = vmatprep.subr.bf16.mxu0 0
          %1592 = vmatpush1.bf16.msra.mxu0 0
          %1593 = vmatprep.subr.bf16.mxu0 0
          %1594 = vmatpush1.bf16.msra.mxu0 0
          %1595 = vmatprep.subr.bf16.mxu0 0
          %1596 = vmatpush1.bf16.msra.mxu0 0
          %1597 = vmatprep.subr.bf16.mxu0 0
          %1598 = vmatpush1.bf16.msra.mxu0 0
          %1599 = vmatprep.subr.bf16.mxu0 0
          %1600 = vmatpush1.bf16.msra.mxu0 0
          %1601 = vmatprep.subr.bf16.mxu0 0
          %1602 = vmatpush1.bf16.msra.mxu0 0
          %1603 = vmatprep.subr.bf16.mxu0 0
          %1604 = vmatpush1.bf16.msra.mxu0 0
          %1605 = vmatprep.subr.bf16.mxu0 0
          %1606 = vmatpush1.bf16.msra.mxu0 0
          %1607 = vmatprep.subr.bf16.mxu0 0
          %1608 = vmatpush1.bf16.msra.mxu0 0
          %1609 = vmatprep.subr.bf16.mxu0 0
          %1610 = vmatpush1.bf16.msra.mxu0 0
          %1611 = vmatprep.subr.bf16.mxu0 0
          %1612 = vmatpush1.bf16.msra.mxu0 0
          %1613 = vmatprep.mubr.bf16.mxu0 0
          %1614 = vmatmul.mubr.bf16.gmra.mrb[0].mxu0 %v1576
          %v1615 = vpop.f32.mrb[0].mxu0
          %v1616 = vadd.f32 0.0, %v1615
          %v1617 = vpop.f32.mrb[0].mxu0
          %v1618 = vpop.f32.mrb[0].mxu0
          %v1619 = vpop.f32.mrb[0].mxu0
          %1620 = vdwg.mxu0
          %1622 = vrot.lane.b32.xlu0 %v1616, 48
          %v1623 = vpop.permute.xlu0 %1622
          %vm1625 = vcmask 523648
          %1626 = vst.msk [vmem:[#allocation5] sm:$0xff] %vm1625, %v1623
          %v1627 = vld [vmem:[#allocation5] sm:$0xff]
          %v1628 = vpack.c.bf16 %v1627, %v1627
          %v1629 = vld [vmem:[#allocation24] sm:$0xf]
          %v1630 = vld [vmem:[#allocation24 + $0x4] sm:$0xf]
          %v1631 = vld [vmem:[#allocation24 + $0x8] sm:$0xf]
          %v1632 = vld [vmem:[#allocation24 + $0xc] sm:$0xf]
          %v1633 = vld [vmem:[#allocation24 + $0x10] sm:$0xf]
          %v1634 = vld [vmem:[#allocation24 + $0x14] sm:$0xf]
          %v1635 = vld [vmem:[#allocation24 + $0x18] sm:$0xf]
          %v1636 = vld [vmem:[#allocation24 + $0x1c] sm:$0xf]
          %v1637 = vld [vmem:[#allocation26] sm:$0x1]
          %v1639 = vlaneseq
          %v1640 = vshrl.u32 %v1639, 7
          %v1641 = vsub.s32 0, %v1640
          %v1642 = vrot.slane %v1637, %v1641
          %v1652 = vunpack.c.l.b16 %v1629
          %v1653 = vunpack.c.l.b16 %v1630
          %v1654 = vunpack.c.l.b16 %v1631
          %v1655 = vunpack.c.l.b16 %v1632
          %v1656 = vunpack.c.l.b16 %v1633
          %v1657 = vunpack.c.l.b16 %v1634
          %v1658 = vunpack.c.l.b16 %v1635
          %v1659 = vunpack.c.l.b16 %v1636
          %v1660 = vpack.c.b16 %v1653, %v1652
          %v1661 = vpack.c.b16 %v1655, %v1654
          %v1662 = vpack.c.b16 %v1657, %v1656
          %v1663 = vpack.c.b16 %v1659, %v1658
          %v1669 = vsel %vm865, %v1628, 0
          %1671 = vmatprep.subr.bf16.mxu0 0
          %1672 = vmatpush1.bf16.msra.mxu0 %v1660
          %1673 = vmatprep.subr.bf16.mxu0 0
          %1674 = vmatpush1.bf16.msra.mxu0 %v1661
          %1675 = vmatprep.subr.bf16.mxu0 0
          %1676 = vmatpush1.bf16.msra.mxu0 %v1662
          %1677 = vmatprep.subr.bf16.mxu0 0
          %1678 = vmatpush1.bf16.msra.mxu0 %v1663
          %1679 = vmatprep.subr.bf16.mxu0 0
          %1680 = vmatpush1.bf16.msra.mxu0 0
          %1681 = vmatprep.subr.bf16.mxu0 0
          %1682 = vmatpush1.bf16.msra.mxu0 0
          %1683 = vmatprep.subr.bf16.mxu0 0
          %1684 = vmatpush1.bf16.msra.mxu0 0
          %1685 = vmatprep.subr.bf16.mxu0 0
          %1686 = vmatpush1.bf16.msra.mxu0 0
          %1687 = vmatprep.subr.bf16.mxu0 0
          %1688 = vmatpush1.bf16.msra.mxu0 0
          %1689 = vmatprep.subr.bf16.mxu0 0
          %1690 = vmatpush1.bf16.msra.mxu0 0
          %1691 = vmatprep.subr.bf16.mxu0 0
          %1692 = vmatpush1.bf16.msra.mxu0 0
          %1693 = vmatprep.subr.bf16.mxu0 0
          %1694 = vmatpush1.bf16.msra.mxu0 0
          %1695 = vmatprep.subr.bf16.mxu0 0
          %1696 = vmatpush1.bf16.msra.mxu0 0
          %1697 = vmatprep.subr.bf16.mxu0 0
          %1698 = vmatpush1.bf16.msra.mxu0 0
          %1699 = vmatprep.subr.bf16.mxu0 0
          %1700 = vmatpush1.bf16.msra.mxu0 0
          %1701 = vmatprep.subr.bf16.mxu0 0
          %1702 = vmatpush1.bf16.msra.mxu0 0
          %1703 = vmatprep.mubr.bf16.mxu0 0
          %1704 = vmatmul.mubr.bf16.gmra.mrb[0].mxu0 %v1669
          %v1705 = vpop.f32.mrb[0].mxu0
          %v1706 = vadd.f32 %v1642, %v1705
          %v1707 = vpop.f32.mrb[0].mxu0
          %v1708 = vpop.f32.mrb[0].mxu0
          %v1709 = vpop.f32.mrb[0].mxu0
          %1710 = vdwg.mxu0
          %v1711 = vadd.f32 %v862, %v1706
          %1712 = vst.msk [vmem:[#allocation6] sm:$0xff] %vm865, %v1711
          %v1713 = vld [vmem:[#allocation27] sm:$0x1]
          %v1714 = vld [vmem:[#allocation29] sm:$0x1]
          %v1715 = vsel %vm865, %v1711, 0.0
          %1716 = vadd.xlane.f32.xlu0 %v1715
          %v1717 = vpop.xlane.xlu0 %1716
          %v1718 = vmul.f32 %v1717, %v869
          %v1719 = vsub.f32 %v1711, %v1718
          %v1720 = vmul.f32 %v1719, %v1719
          %v1721 = vsel %vm865, %v1720, 0.0
          %1722 = vadd.xlane.f32.xlu0 %v1721
          %v1723 = vpop.xlane.xlu0 %1722
          %v1724 = vmul.f32 %v1723, %v869
          %v1725 = vadd.f32 %v1724, 1e-05
          %v1726 = vrsqrt.pop %v1725
          %v1727 = vmul.f32 %v1719, %v1726
          %v1729 = vlaneseq
          %v1730 = vshrl.u32 %v1729, 7
          %v1731 = vsub.s32 0, %v1730
          %v1732 = vrot.slane %v1713, %v1731
          %v1734 = vmul.f32 %v1727, %v1732
          %v1736 = vlaneseq
          %v1737 = vshrl.u32 %v1736, 7
          %v1738 = vsub.s32 0, %v1737
          %v1739 = vrot.slane %v1714, %v1738
          %v1741 = vadd.f32 %v1734, %v1739
          %v1742 = vpack.c.bf16 %v1741, %v1741
          %vm1743 = vcmask 519168
          %1744 = vst.msk [vmem:[#allocation7] sm:$0xf] %vm1743, %v1742
          %1745 = vst.msk [vmem:[#allocation8] sm:$0xff] %vm865, 0.0
        $region160: #{residual_attention_block.1} parent=87 // pred_fallthru
          _
        %v1746 = vld [vmem:[#allocation7] sm:$0xf]
        %v1747 = vld [vmem:[%s770] sm:$0xf]
        %v1748 = vld [vmem:[%s770 + $0x4] sm:$0xf]
        %v1749 = vld [vmem:[%s770 + $0x8] sm:$0xf]
        %v1750 = vld [vmem:[%s770 + $0xc] sm:$0xf]
        %v1751 = vld [vmem:[%s770 + $0x10] sm:$0xf]
        %v1752 = vld [vmem:[%s770 + $0x14] sm:$0xf]
        %v1753 = vld [vmem:[%s770 + $0x18] sm:$0xf]
        %v1754 = vld [vmem:[%s770 + $0x1c] sm:$0xf]
        %v1755 = vld [vmem:[%s778] sm:$0x1]
        %v1757 = vlaneseq
        %v1758 = vshrl.u32 %v1757, 7
        %v1759 = vsub.s32 0, %v1758
        %v1760 = vrot.slane %v1755, %v1759
        %v1770 = vunpack.c.l.b16 %v1747
        %v1771 = vunpack.c.l.b16 %v1748
        %v1772 = vunpack.c.l.b16 %v1749
        %v1773 = vunpack.c.l.b16 %v1750
        %v1774 = vunpack.c.l.b16 %v1751
        %v1775 = vunpack.c.l.b16 %v1752
        %v1776 = vunpack.c.l.b16 %v1753
        %v1777 = vunpack.c.l.b16 %v1754
        %v1778 = vpack.c.b16 %v1771, %v1770
        %v1779 = vpack.c.b16 %v1773, %v1772
        %v1780 = vpack.c.b16 %v1775, %v1774
        %v1781 = vpack.c.b16 %v1777, %v1776
        %vm1786 = vcmask 523264
        %v1788 = vsel %vm1786, %v1746, 0
        %1790 = vmatprep.subr.bf16.mxu0 0
        %1791 = vmatpush1.bf16.msra.mxu0 %v1778
        %1792 = vmatprep.subr.bf16.mxu0 0
        %1793 = vmatpush1.bf16.msra.mxu0 %v1779
        %1794 = vmatprep.subr.bf16.mxu0 0
        %1795 = vmatpush1.bf16.msra.mxu0 %v1780
        %1796 = vmatprep.subr.bf16.mxu0 0
        %1797 = vmatpush1.bf16.msra.mxu0 %v1781
        %1798 = vmatprep.subr.bf16.mxu0 0
        %1799 = vmatpush1.bf16.msra.mxu0 0
        %1800 = vmatprep.subr.bf16.mxu0 0
        %1801 = vmatpush1.bf16.msra.mxu0 0
        %1802 = vmatprep.subr.bf16.mxu0 0
        %1803 = vmatpush1.bf16.msra.mxu0 0
        %1804 = vmatprep.subr.bf16.mxu0 0
        %1805 = vmatpush1.bf16.msra.mxu0 0
        %1806 = vmatprep.subr.bf16.mxu0 0
        %1807 = vmatpush1.bf16.msra.mxu0 0
        %1808 = vmatprep.subr.bf16.mxu0 0
        %1809 = vmatpush1.bf16.msra.mxu0 0
        %1810 = vmatprep.subr.bf16.mxu0 0
        %1811 = vmatpush1.bf16.msra.mxu0 0
        %1812 = vmatprep.subr.bf16.mxu0 0
        %1813 = vmatpush1.bf16.msra.mxu0 0
        %1814 = vmatprep.subr.bf16.mxu0 0
        %1815 = vmatpush1.bf16.msra.mxu0 0
        %1816 = vmatprep.subr.bf16.mxu0 0
        %1817 = vmatpush1.bf16.msra.mxu0 0
        %1818 = vmatprep.subr.bf16.mxu0 0
        %1819 = vmatpush1.bf16.msra.mxu0 0
        %1820 = vmatprep.subr.bf16.mxu0 0
        %1821 = vmatpush1.bf16.msra.mxu0 0
        %1822 = vmatprep.mubr.bf16.mxu0 0
        %1823 = vmatmul.mubr.bf16.gmra.mrb[0].mxu0 %v1788
        %v1824 = vpop.f32.mrb[0].mxu0
        %v1825 = vadd.f32 %v1760, %v1824
        %v1826 = vpop.f32.mrb[0].mxu0
        %v1827 = vpop.f32.mrb[0].mxu0
        %v1828 = vpop.f32.mrb[0].mxu0
        %1829 = vdwg.mxu0
        %v1830 = vmul.f32 %v1825, 1.702
        %v1831 = vxor.u32 %v1830, 2147483648
        %v1832 = vmul.f32 %v1831, 1.442695
        %v1833 = vpow.pop %v1832
        %v1834 = vadd.f32 %v1833, 1.0
        %v1835 = vrcp.pop %v1834
        %v1836 = vmul.f32 1.0, %v1835
        %v1837 = vmul.f32 %v1825, %v1836
        %v1838 = vld [vmem:[#allocation8] sm:$0xff]
        %v1839 = vpack.c.bf16 %v1837, %v1837
        %v1840 = vld [vmem:[%s787] sm:$0xf]
        %v1841 = vld [vmem:[%s787 + $0x4] sm:$0xf]
        %v1842 = vld [vmem:[%s787 + $0x8] sm:$0xf]
        %v1843 = vld [vmem:[%s787 + $0xc] sm:$0xf]
        %v1844 = vld [vmem:[%s787 + $0x10] sm:$0xf]
        %v1845 = vld [vmem:[%s787 + $0x14] sm:$0xf]
        %v1846 = vld [vmem:[%s787 + $0x18] sm:$0xf]
        %v1847 = vld [vmem:[%s787 + $0x1c] sm:$0xf]
        %v1848 = vld [vmem:[%s787 + $0x20] sm:$0xf]
        %v1849 = vld [vmem:[%s787 + $0x24] sm:$0xf]
        %v1850 = vld [vmem:[%s787 + $0x28] sm:$0xf]
        %v1851 = vld [vmem:[%s787 + $0x2c] sm:$0xf]
        %v1852 = vld [vmem:[%s787 + $0x30] sm:$0xf]
        %v1853 = vld [vmem:[%s787 + $0x34] sm:$0xf]
        %v1854 = vld [vmem:[%s787 + $0x38] sm:$0xf]
        %v1855 = vld [vmem:[%s787 + $0x3c] sm:$0xf]
        %v1872 = vunpack.c.l.b16 %v1840
        %v1873 = vunpack.c.l.b16 %v1841
        %v1874 = vunpack.c.l.b16 %v1842
        %v1875 = vunpack.c.l.b16 %v1843
        %v1876 = vunpack.c.l.b16 %v1844
        %v1877 = vunpack.c.l.b16 %v1845
        %v1878 = vunpack.c.l.b16 %v1846
        %v1879 = vunpack.c.l.b16 %v1847
        %v1880 = vunpack.c.l.b16 %v1848
        %v1881 = vunpack.c.l.b16 %v1849
        %v1882 = vunpack.c.l.b16 %v1850
        %v1883 = vunpack.c.l.b16 %v1851
        %v1884 = vunpack.c.l.b16 %v1852
        %v1885 = vunpack.c.l.b16 %v1853
        %v1886 = vunpack.c.l.b16 %v1854
        %v1887 = vunpack.c.l.b16 %v1855
        %v1888 = vpack.c.b16 %v1873, %v1872
        %v1889 = vpack.c.b16 %v1875, %v1874
        %v1890 = vpack.c.b16 %v1877, %v1876
        %v1891 = vpack.c.b16 %v1879, %v1878
        %v1892 = vpack.c.b16 %v1881, %v1880
        %v1893 = vpack.c.b16 %v1883, %v1882
        %v1894 = vpack.c.b16 %v1885, %v1884
        %v1895 = vpack.c.b16 %v1887, %v1886
        %1904 = vmatprep.subr.bf16.mxu0 0
        %1905 = vmatpush1.bf16.msra.mxu0 %v1888
        %1906 = vmatprep.subr.bf16.mxu0 0
        %1907 = vmatpush1.bf16.msra.mxu0 %v1889
        %1908 = vmatprep.subr.bf16.mxu0 0
        %1909 = vmatpush1.bf16.msra.mxu0 %v1890
        %1910 = vmatprep.subr.bf16.mxu0 0
        %1911 = vmatpush1.bf16.msra.mxu0 %v1891
        %1912 = vmatprep.subr.bf16.mxu0 0
        %1913 = vmatpush1.bf16.msra.mxu0 %v1892
        %1914 = vmatprep.subr.bf16.mxu0 0
        %1915 = vmatpush1.bf16.msra.mxu0 %v1893
        %1916 = vmatprep.subr.bf16.mxu0 0
        %1917 = vmatpush1.bf16.msra.mxu0 %v1894
        %1918 = vmatprep.subr.bf16.mxu0 0
        %1919 = vmatpush1.bf16.msra.mxu0 %v1895
        %1920 = vmatprep.subr.bf16.mxu0 0
        %1921 = vmatpush1.bf16.msra.mxu0 0
        %1922 = vmatprep.subr.bf16.mxu0 0
        %1923 = vmatpush1.bf16.msra.mxu0 0
        %1924 = vmatprep.subr.bf16.mxu0 0
        %1925 = vmatpush1.bf16.msra.mxu0 0
        %1926 = vmatprep.subr.bf16.mxu0 0
        %1927 = vmatpush1.bf16.msra.mxu0 0
        %1928 = vmatprep.subr.bf16.mxu0 0
        %1929 = vmatpush1.bf16.msra.mxu0 0
        %1930 = vmatprep.subr.bf16.mxu0 0
        %1931 = vmatpush1.bf16.msra.mxu0 0
        %1932 = vmatprep.subr.bf16.mxu0 0
        %1933 = vmatpush1.bf16.msra.mxu0 0
        %1934 = vmatprep.subr.bf16.mxu0 0
        %1935 = vmatpush1.bf16.msra.mxu0 0
        %1936 = vmatprep.mubr.bf16.mxu0 0
        %1937 = vmatmul.mubr.bf16.gmra.mrb[0].mxu0 %v1839
        %v1938 = vpop.f32.mrb[0].mxu0
        %v1939 = vadd.f32 0.0, %v1938
        %v1940 = vpop.f32.mrb[0].mxu0
        %v1941 = vpop.f32.mrb[0].mxu0
        %v1942 = vpop.f32.mrb[0].mxu0
        %1943 = vdwg.mxu0
        %v1944 = vadd.f32 %v1838, %v1939
        %1945 = vst.msk [vmem:[#allocation8] sm:$0xff] %vm1786, %v1944
        %p1946 = scmp.eq.s32.totalorder %s51, 1
        // Predicated region
        $region161: #{residual_attention_block.1} parent=87 // pred_check
          %p1947 = pneg %p1946
        $region162: #{residual_attention_block.1} parent=87 // pred_check_branch
          %1949 = sbr.rel (%p1947) target = $region164
        $region163: #{residual_attention_block.1} parent=87 // pred_region
          %v1950 = vld [vmem:[#allocation6] sm:$0xff]
          %v1951 = vld [vmem:[#allocation8] sm:$0xff]
          %v1952 = vadd.f32 %v1950, %v1951
          %v1953 = vld [vmem:[#allocation35] sm:$0x1]
          %v1955 = vlaneseq
          %v1956 = vshrl.u32 %v1955, 7
          %v1957 = vsub.s32 0, %v1956
          %v1958 = vrot.slane %v1953, %v1957
          %v1960 = vadd.f32 %v1952, %v1958
          %1961 = vst.msk [vmem:[%s855] sm:$0xff] %vm1786, %v1960
        $region164: #{residual_attention_block.1} parent=87 // pred_fallthru
          _
        %s1962 = sand.u32 %s443, 1
        %s1963 = scalar_lea.sflag [#allocation11], %s1962
        %s1964 = sand.u32 %s443, 1
        %s1965 = smul.addr %s1964, 8
        %s1966 = scalar_lea.vmem [#allocation36], %s1965
        // Predicated region
        $region165: #{residual_attention_block.1} parent=87 // pred_check
          %p1967 = pneg %p453
        $region166: #{residual_attention_block.1} parent=87 // pred_check_branch
          %1969 = sbr.rel (%p1967) target = $region168
        $region167: #{residual_attention_block.1} parent=87 // pred_region
          %s1971 = ssub.s32 128, 128
          %1972 = vsyncadd %s1963, %s1971
          %s1973 = smul.addr %s50, 128
          %s1974 = scalar_lea.hbm %s17, %s1973
          %s1976 = sshll.u32 %s1966, 4
          %s1977 = int_to_ptr.vmem [resolvable:$true] %s1976
          %1979 = dma.vmem_to_hbm [thread:$0]  %s1977, 128, %s1974, %s1963
        $region168: #{residual_attention_block.1} parent=87 // pred_fallthru
          _
      $region88: #{residual_attention_block.1} parent=5 // pred_fallthru
        _
      %p1980 = scmp.le.s32.totalorder 2, %s41
      // Predicated region
      $region169: #{residual_attention_block.1} parent=5 // pred_check
        %p1981 = pneg %p1980
      $region170: #{residual_attention_block.1} parent=5 // pred_check_branch
        %1983 = sbr.rel (%p1981) target = $region172
      $region171: #{residual_attention_block.1} parent=5 // pred_region
        %s1984 = ssub.s32 %s41, 2
        // Predicated region
        $region173: #{residual_attention_block.1} parent=171 // pred_check
          %p1985 = pneg %p459
        $region174: #{residual_attention_block.1} parent=171 // pred_check_branch
          %1987 = sbr.rel (%p1985) target = $region176
        $region175: #{residual_attention_block.1} parent=171 // pred_region
          %s1988 = sand.u32 %s444, 1
          %s1989 = scalar_lea.sflag [#allocation11], %s1988
          %s1990 = sand.u32 %s444, 1
          %s1991 = smul.addr %s1990, 8
          %s1992 = scalar_lea.vmem [#allocation36], %s1991
          %1993 = dma.done %s1989, 128
        $region176: #{residual_attention_block.1} parent=171 // pred_fallthru
          _
      $region172: #{residual_attention_block.1} parent=5 // pred_fallthru
        _
    $region6: #{residual_attention_block.1} parent=1 // loop_footer
      %s45 = sadd.s32 1, %s41
    $region7: #{residual_attention_block.1} parent=1 // loop_footer_branch
      %40 = sbr.rel target = $region3
    $region8: #{residual_attention_block.1} parent=1 // loop_exit
      _
    %1994 = vsyncpa [#allocation10], 1
    %s1995 = scalar_lea.sflag [#allocation10], 1
    %1996 = vsyncpa %s1995, 1
    %1997 = vsyncpa [#allocation13], 1
    %1998 = vsyncpa [#allocation16], 1
    %1999 = vsyncpa [#allocation19], 1
    %2000 = vsyncpa [#allocation22], 1
    %2001 = vsyncpa [#allocation25], 1
    %2002 = vsyncpa [#allocation28], 1
    %2003 = vsyncpa [#allocation31], 1
    %s2004 = scalar_lea.sflag [#allocation31], 1
    %2005 = vsyncpa %s2004, 1
    %2006 = vsyncpa [#allocation34], 1
    %s2007 = scalar_lea.sflag [#allocation34], 1
    %2008 = vsyncpa %s2007, 1
    %2009 = vsyncpa [#allocation11], 1
    %s2010 = scalar_lea.sflag [#allocation11], 1
    %2011 = vsyncpa %s2010, 1

</llo_original>
